<compile_context>
chip_gen: v7x
topology: tpu7x:2x2x1
jax: 0.10.0
libtpu: 0.0.40
codegen_flags: <defaults>
</compile_context>

<pallas_src>
import math
import functools

import jax
import jax.numpy as jnp
from jax import lax
from jax.experimental import pallas as pl
from jax.experimental.pallas import tpu as pltpu


# ----------------------------------------------------------------------------
# device-generation defaults (tile sizes / scoped-VMEM limit)
# ----------------------------------------------------------------------------
_DEFAULTS_CACHE = None


def _defaults():
    global _DEFAULTS_CACHE
    if _DEFAULTS_CACHE is not None:
        return _DEFAULTS_CACHE
    kind = ""
    try:
        kind = jax.devices()[0].device_kind.lower()
    except Exception:
        pass
    if ("v7" in kind) or ("7x" in kind):
        # 64 MiB VMEM / TC -> conservative tiles, explicit 48 MiB scoped limit
        d = dict(vmem=48 * 1024 * 1024, lin_tm=256, lin_tn=512, lin_tk=512,
                 attn_t=256)
    elif ("v5" in kind) or ("v6" in kind):
        # 128 MiB VMEM -> bigger tiles amortize per-grid-step overhead
        d = dict(vmem=96 * 1024 * 1024, lin_tm=256, lin_tn=1024, lin_tk=1024,
                 attn_t=512)
    else:
        d = dict(vmem=None, lin_tm=256, lin_tn=512, lin_tk=512, attn_t=256)
    _DEFAULTS_CACHE = d
    return d


def _compiler_params(sem):
    d = _defaults()
    kw = dict(dimension_semantics=sem)
    if d["vmem"] is not None:
        kw["vmem_limit_bytes"] = d["vmem"]
    return pltpu.CompilerParams(**kw)


def _pick_tile(dim, pref, align):
    """Largest tile <= pref that divides `dim` and is a multiple of `align`.
    Falls back to the full dim (always a legal block size)."""
    if dim <= pref:
        return dim
    t = (pref // align) * align
    while t >= align:
        if dim % t == 0:
            return t
        t -= align
    return dim


def _rotate_half_tile(x2d):
    half = x2d.shape[-1] // 2
    # TODO(synk): switch to pltpu.roll(x, half, axis=-1) * sign_row when the
    # rope dim is a full lane tile (>=128); concat is safe at tiny dims.
    return jnp.concatenate([-x2d[:, half:], x2d[:, :half]], axis=-1)


# ----------------------------------------------------------------------------
# Tiled linear:  y = x @ W + b        (W passed pre-transposed as [K, N], bf16)
# ----------------------------------------------------------------------------
def _linear_kernel(x_ref, w_ref, b_ref, o_ref, acc_ref):
    @pl.when(pl.program_id(2) == 0)
    def _():
        acc_ref[...] = jnp.zeros_like(acc_ref)

    acc_ref[...] += jnp.dot(x_ref[...], w_ref[...],
                            preferred_element_type=jnp.float32)

    @pl.when(pl.program_id(2) == pl.num_programs(2) - 1)
    def _():
        o_ref[...] = (acc_ref[...] + b_ref[...]).astype(o_ref.dtype)


def linear(x2d, w_kn, b, *, out_dtype=jnp.bfloat16):
    d = _defaults()
    M, K = x2d.shape
    N = w_kn.shape[1]
    TM = _pick_tile(M, d["lin_tm"], 16)
    TN = _pick_tile(N, d["lin_tn"], 128)
    TK = _pick_tile(K, d["lin_tk"], 128)
    grid = (M // TM, N // TN, K // TK)
    return pl.pallas_call(
        _linear_kernel,
        out_shape=jax.ShapeDtypeStruct((M, N), out_dtype),
        grid=grid,
        in_specs=[
            pl.BlockSpec((TM, TK), lambda i, j, k: (i, k)),
            pl.BlockSpec((TK, TN), lambda i, j, k: (k, j)),
            pl.BlockSpec((1, TN), lambda i, j, k: (0, j)),
        ],
        out_specs=pl.BlockSpec((TM, TN), lambda i, j, k: (i, j)),
        scratch_shapes=[pltpu.VMEM((TM, TN), jnp.float32)],
        compiler_params=_compiler_params(("parallel", "parallel", "arbitrary")),
    )(x2d, w_kn, b.reshape(1, N).astype(jnp.float32))


# ----------------------------------------------------------------------------
# Tiled linear fused with RMSNorm epilogue:  y = g * rmsnorm(x @ W + b)
# (N kept un-tiled — the norm needs the whole row; N is the small lora rank)
# ----------------------------------------------------------------------------
def _linear_rmsnorm_kernel(x_ref, w_ref, b_ref, g_ref, o_ref, acc_ref, *, eps):
    @pl.when(pl.program_id(1) == 0)
    def _():
        acc_ref[...] = jnp.zeros_like(acc_ref)

    acc_ref[...] += jnp.dot(x_ref[...], w_ref[...],
                            preferred_element_type=jnp.float32)

    @pl.when(pl.program_id(1) == pl.num_programs(1) - 1)
    def _():
        y = acc_ref[...] + b_ref[...]
        var = jnp.mean(y * y, axis=-1, keepdims=True)
        o_ref[...] = (g_ref[...] * (y * lax.rsqrt(var + eps))).astype(o_ref.dtype)


def linear_rmsnorm(x2d, w_kn, b, gamma, *, eps=1e-6):
    d = _defaults()
    M, K = x2d.shape
    N = w_kn.shape[1]
    TM = _pick_tile(M, d["lin_tm"], 16)
    TK = _pick_tile(K, d["lin_tk"], 128)
    grid = (M // TM, K // TK)
    return pl.pallas_call(
        functools.partial(_linear_rmsnorm_kernel, eps=eps),
        out_shape=jax.ShapeDtypeStruct((M, N), jnp.bfloat16),
        grid=grid,
        in_specs=[
            pl.BlockSpec((TM, TK), lambda i, k: (i, k)),
            pl.BlockSpec((TK, N), lambda i, k: (k, 0)),
            pl.BlockSpec((1, N), lambda i, k: (0, 0)),
            pl.BlockSpec((1, N), lambda i, k: (0, 0)),
        ],
        out_specs=pl.BlockSpec((TM, N), lambda i, k: (i, 0)),
        scratch_shapes=[pltpu.VMEM((TM, N), jnp.float32)],
        compiler_params=_compiler_params(("parallel", "arbitrary")),
    )(x2d, w_kn, b.reshape(1, N).astype(jnp.float32),
      gamma.reshape(1, N).astype(jnp.float32))


# ----------------------------------------------------------------------------
# wkv_a fused kernel:  y = x @ W + b,  split y -> [kv | k_pe],
# RMSNorm(kv) and rotary(k_pe) in the epilogue; output is the concatenated
# (normed-kv ‖ roped-k_pe) bf16 slab ready for the fused attention score matmul.
# ----------------------------------------------------------------------------
def _wkv_a_kernel(x_ref, w_ref, b_ref, g_ref, cos_ref, sin_ref, o_ref, acc_ref,
                  *, eps, c_dim):
    @pl.when(pl.program_id(1) == 0)
    def _():
        acc_ref[...] = jnp.zeros_like(acc_ref)

    acc_ref[...] += jnp.dot(x_ref[...], w_ref[...],
                            preferred_element_type=jnp.float32)

    @pl.when(pl.program_id(1) == pl.num_programs(1) - 1)
    def _():
        y = acc_ref[...] + b_ref[...]
        kv = y[:, :c_dim]
        var = jnp.mean(kv * kv, axis=-1, keepdims=True)
        kv_n = g_ref[...] * (kv * lax.rsqrt(var + eps))
        kp = y[:, c_dim:]
        kp_rot = kp * cos_ref[...] + _rotate_half_tile(kp) * sin_ref[...]
        o_ref[...] = jnp.concatenate([kv_n, kp_rot], axis=-1).astype(o_ref.dtype)


def wkv_a_fused(x2d, w_kn, b, gamma, cos_m, sin_m, c_dim, *, eps=1e-6):
    d = _defaults()
    M, K = x2d.shape
    N = w_kn.shape[1]
    Dr = cos_m.shape[-1]
    TM = _pick_tile(M, d["lin_tm"], 16)
    TK = _pick_tile(K, d["lin_tk"], 128)
    grid = (M // TM, K // TK)
    return pl.pallas_call(
        functools.partial(_wkv_a_kernel, eps=eps, c_dim=c_dim),
        out_shape=jax.ShapeDtypeStruct((M, N), jnp.bfloat16),
        grid=grid,
        in_specs=[
            pl.BlockSpec((TM, TK), lambda i, k: (i, k)),
            pl.BlockSpec((TK, N), lambda i, k: (k, 0)),
            pl.BlockSpec((1, N), lambda i, k: (0, 0)),
            pl.BlockSpec((1, c_dim), lambda i, k: (0, 0)),
            pl.BlockSpec((TM, Dr), lambda i, k: (i, 0)),
            pl.BlockSpec((TM, Dr), lambda i, k: (i, 0)),
        ],
        out_specs=pl.BlockSpec((TM, N), lambda i, k: (i, 0)),
        scratch_shapes=[pltpu.VMEM((TM, N), jnp.float32)],
        compiler_params=_compiler_params(("parallel", "arbitrary")),
    )(x2d, w_kn, b.reshape(1, N).astype(jnp.float32),
      gamma.reshape(1, c_dim).astype(jnp.float32), cos_m, sin_m)


# ----------------------------------------------------------------------------
# Flash-style MLA attention over a lower-triangular (qi, ki) grid
# ----------------------------------------------------------------------------
def _mla_attn_kernel(qi_tbl_ref, ki_tbl_ref,                      # SMEM prefetch
                     q_ref, kvc_ref, cosq_ref, sinq_ref, wn_ref, wv_ref,
                     o_ref,
                     m_sc, l_sc, acc_sc, qcat_sc,
                     *, scale, nope, c_dim, tq, tk):
    t = pl.program_id(2)
    qi = qi_tbl_ref[t]
    ki = ki_tbl_ref[t]

    # ---- once per (b, h, qi): init stats and hoist all q-side preprocessing
    @pl.when(ki == 0)
    def _():
        m_sc[...] = jnp.full_like(m_sc, -jnp.inf)
        l_sc[...] = jnp.zeros_like(l_sc)
        acc_sc[...] = jnp.zeros_like(acc_sc)

        q = q_ref[0, 0]                                   # [TQ, Dn+Dr] bf16
        q_n = q[:, :nope]                                 # [TQ, Dn]    bf16
        q_p = q[:, nope:].astype(jnp.float32)             # [TQ, Dr]    f32
        q_p = q_p * cosq_ref[...] + _rotate_half_tile(q_p) * sinq_ref[...]

        # absorb per-head nope projection: q_nope -> latent space (bf16 MXU)
        w_n = wn_ref[0]                                   # [Dn, C] bf16
        q_abs = jnp.dot(q_n, w_n, preferred_element_type=jnp.float32)  # [TQ,C]

        q_cat = jnp.concatenate([q_abs, q_p], axis=-1) * scale   # [TQ, C+Dr]
        qcat_sc[...] = q_cat.astype(qcat_sc.dtype)                # bf16 scratch

    # ---- per (qi, ki) tile: fused score matmul over (latent ‖ rope) dim
    kvc = kvc_ref[0]                                      # [TK, C+Dr] bf16
    s = lax.dot_general(qcat_sc[...], kvc, (((1,), (1,)), ((), ())),
                        preferred_element_type=jnp.float32)       # [TQ, TK]

    # causal mask (global positions); all-false on strictly-interior tiles
    row = qi * tq + lax.broadcasted_iota(jnp.int32, (tq, tk), 0)
    col = ki * tk + lax.broadcasted_iota(jnp.int32, (tq, tk), 1)
    s = jnp.where(col > row, -jnp.inf, s)

    # online softmax update (f32 statistics)
    m_prev = m_sc[...]
    m_new = jnp.maximum(m_prev, jnp.max(s, axis=-1, keepdims=True))
    alpha = jnp.exp(m_prev - m_new)
    p = jnp.exp(s - m_new)
    l_sc[...] = alpha * l_sc[...] + jnp.sum(p, axis=-1, keepdims=True)

    kv_lat = kvc[:, :c_dim]                               # [TK, C] bf16
    acc_sc[...] = alpha * acc_sc[...] + jnp.dot(
        p.astype(kv_lat.dtype), kv_lat, preferred_element_type=jnp.float32)
    m_sc[...] = m_new

    # ---- last causal tile for this q tile (TQ == TK ⇒ ki == qi): finalize
    @pl.when(ki == qi)
    def _():
        inv_l = pl.reciprocal(l_sc[...], approx=True)
        ctx = acc_sc[...] * inv_l                         # [TQ, C] f32
        w_v = wv_ref[0]                                   # [C, Dv] bf16
        o_ref[0, 0] = jnp.dot(ctx.astype(w_v.dtype), w_v,
                              preferred_element_type=jnp.float32
                              ).astype(o_ref.dtype)


def mla_attention(q, kv_cat, cos_s, sin_s, w_nope, w_vT, scale, nope, c_dim):
    """q:[B,H,S,Dn+Dr] bf16 (rope NOT yet applied to pe part)
       kv_cat:[B,S,C+Dr] bf16 (kv RMS-normed, k_pe roped)
       cos_s/sin_s:[S,Dr] f32   w_nope:[H,Dn,C] bf16   w_vT:[H,C,Dv] bf16
       -> [B,H,S,Dv] bf16"""
    d = _defaults()
    B, H, S, Dq = q.shape
    Dr = Dq - nope
    CDr = kv_cat.shape[-1]
    Dv = w_vT.shape[-1]

    T = _pick_tile(S, d["attn_t"], 16)          # TQ == TK == T
    # The online-softmax init (ki==0) / finalize (ki==qi) logic requires the
    # tile to divide S exactly; _pick_tile guarantees it, assert to be safe.
    assert S % T == 0, "attention tile must divide the sequence length"
    nt = S // T

    # lower-triangular step tables: only causal-relevant (qi, ki) pairs
    steps = [(qi, ki) for qi in range(nt) for ki in range(qi + 1)]
    qi_tbl = jnp.asarray([s[0] for s in steps], dtype=jnp.int32)
    ki_tbl = jnp.asarray([s[1] for s in steps], dtype=jnp.int32)
    nsteps = len(steps)

    kern = functools.partial(_mla_attn_kernel, scale=scale, nope=nope,
                             c_dim=c_dim, tq=T, tk=T)
    grid_spec = pltpu.PrefetchScalarGridSpec(
        num_scalar_prefetch=2,
        grid=(B, H, nsteps),
        in_specs=[
            pl.BlockSpec((1, 1, T, Dq), lambda b, h, t, qt, kt: (b, h, qt[t], 0)),
            pl.BlockSpec((1, T, CDr),   lambda b, h, t, qt, kt: (b, kt[t], 0)),
            pl.BlockSpec((T, Dr),       lambda b, h, t, qt, kt: (qt[t], 0)),
            pl.BlockSpec((T, Dr),       lambda b, h, t, qt, kt: (qt[t], 0)),
            pl.BlockSpec((1, nope, c_dim), lambda b, h, t, qt, kt: (h, 0, 0)),
            pl.BlockSpec((1, c_dim, Dv),   lambda b, h, t, qt, kt: (h, 0, 0)),
        ],
        out_specs=pl.BlockSpec((1, 1, T, Dv),
                               lambda b, h, t, qt, kt: (b, h, qt[t], 0)),
        scratch_shapes=[
            pltpu.VMEM((T, 1), jnp.float32),      # running max
            pltpu.VMEM((T, 1), jnp.float32),      # running denom
            pltpu.VMEM((T, c_dim), jnp.float32),  # latent-space accumulator
            pltpu.VMEM((T, CDr), jnp.bfloat16),   # hoisted q_cat (per q tile)
        ],
    )
    return pl.pallas_call(
        kern,
        out_shape=jax.ShapeDtypeStruct((B, H, S, Dv), jnp.bfloat16),
        grid_spec=grid_spec,
        compiler_params=_compiler_params(("parallel", "parallel", "arbitrary")),
    )(qi_tbl, ki_tbl, q, kv_cat, cos_s, sin_s, w_nope, w_vT)


# ----------------------------------------------------------------------------
# Rotary embedding tables (matches the PyTorch reference exactly)
# ----------------------------------------------------------------------------
def rotary_embedding(dim, max_seq_len):
    inv_freq = 1.0 / 10000 ** (jnp.arange(0, dim, 2, dtype=jnp.float32) / dim)
    t = jnp.arange(max_seq_len, dtype=jnp.float32)
    freqs = t[:, None] * inv_freq[None, :]
    freqs = jnp.concatenate([freqs, freqs], axis=-1)
    return jnp.cos(freqs), jnp.sin(freqs)


def rotate_half(x):
    x1, x2 = jnp.split(x, 2, axis=-1)
    return jnp.concatenate([-x2, x1], axis=-1)


# ----------------------------------------------------------------------------
# One-time parameter preparation (transposes / reshapes / bf16 casts)
# ----------------------------------------------------------------------------
def prepare_params(params, cfg):
    nh = cfg["num_attention_heads"]
    nope = cfg["qk_nope_head_dim"]
    rope = cfg["qk_rope_head_dim"]
    vdim = cfg["v_head_dim"]
    kv_lora = cfg["kv_lora_rank"]
    bf = jnp.bfloat16
    f32 = jnp.float32
    wkv_b = params["wkv_b_w"].reshape(nh, nope + vdim, kv_lora)
    cos, sin = rotary_embedding(rope, cfg["max_seq_len"])
    return {
        "wq_a_wT": params["wq_a_w"].T.astype(bf),
        "wq_a_b": params["wq_a_b"].astype(f32),
        "q_norm_w": params["q_norm_w"].astype(f32),
        "wq_b_wT": params["wq_b_w"].T.astype(bf),
        "wq_b_b": params["wq_b_b"].astype(f32),
        "wkv_a_wT": params["wkv_a_w"].T.astype(bf),
        "wkv_a_b": params["wkv_a_b"].astype(f32),
        "kv_norm_w": params["kv_norm_w"].astype(f32),
        "w_nope": wkv_b[:, :nope, :].astype(bf),                      # [H,Dn,C]
        "w_vT": jnp.transpose(wkv_b[:, nope:, :], (0, 2, 1)).astype(bf),  # [H,C,Dv]
        "wo_wT": params["wo_w"].T.astype(bf),
        "wo_b": params["wo_b"].astype(f32),
        "cos": cos.astype(f32),
        "sin": sin.astype(f32),
    }


# ----------------------------------------------------------------------------
# MLA forward
# ----------------------------------------------------------------------------
def mla_forward(x, prepped, cfg):
    bs, S, hidden = x.shape
    nh = cfg["num_attention_heads"]
    nope = cfg["qk_nope_head_dim"]
    rope = cfg["qk_rope_head_dim"]
    vdim = cfg["v_head_dim"]
    kv_lora = cfg["kv_lora_rank"]
    qk_head_dim = nope + rope
    scale = 1.0 / math.sqrt(qk_head_dim)

    x2 = x.reshape(bs * S, hidden).astype(jnp.bfloat16)

    cos_s = prepped["cos"][:S]                                   # [S, Dr]
    sin_s = prepped["sin"][:S]
    cos_m = jnp.tile(cos_s, (bs, 1))                             # [B*S, Dr]
    sin_m = jnp.tile(sin_s, (bs, 1))

    # q path: (wq_a + RMSNorm) fused, then wq_b
    q = linear_rmsnorm(x2, prepped["wq_a_wT"], prepped["wq_a_b"],
                       prepped["q_norm_w"])
    q = linear(q, prepped["wq_b_wT"], prepped["wq_b_b"], out_dtype=jnp.bfloat16)
    q = q.reshape(bs, S, nh, qk_head_dim).transpose(0, 2, 1, 3)  # [B,H,S,Dq]

    # kv path: (wkv_a + kv RMSNorm + k_pe rotary + concat) fused
    kv_cat = wkv_a_fused(x2, prepped["wkv_a_wT"], prepped["wkv_a_b"],
                         prepped["kv_norm_w"], cos_m, sin_m, kv_lora)
    kv_cat = kv_cat.reshape(bs, S, kv_lora + rope)               # [B,S,C+Dr]

    # flash-style MLA attention on the lower-triangular tile grid
    attn = mla_attention(q, kv_cat, cos_s, sin_s, prepped["w_nope"],
                         prepped["w_vT"], scale, nope, kv_lora)  # [B,H,S,Dv]

    # merge heads and output projection
    out = attn.transpose(0, 2, 1, 3).reshape(bs * S, nh * vdim)
    out = linear(out, prepped["wo_wT"], prepped["wo_b"], out_dtype=jnp.float32)
    return out.reshape(bs, S, hidden)


# ----------------------------------------------------------------------------
# Pure-JAX f32 reference (for verification only)
# ----------------------------------------------------------------------------
def mla_reference(x, params, cfg):
    bs, S, hidden = x.shape
    nh = cfg["num_attention_heads"]
    nope = cfg["qk_nope_head_dim"]
    rope = cfg["qk_rope_head_dim"]
    vdim = cfg["v_head_dim"]
    kv_lora = cfg["kv_lora_rank"]
    qk_head_dim = nope + rope

    def lin(h, w, b):
        return h @ w.T + b

    def rms(h, w, eps=1e-6):
        var = jnp.mean(h * h, axis=-1, keepdims=True)
        return w * (h * lax.rsqrt(var + eps))

    q = lin(x, params["wq_a_w"], params["wq_a_b"])
    q = rms(q, params["q_norm_w"])
    q = lin(q, params["wq_b_w"], params["wq_b_b"])
    q = q.reshape(bs, S, nh, qk_head_dim)
    q_nope, q_pe = q[..., :nope], q[..., nope:]

    kv_full = lin(x, params["wkv_a_w"], params["wkv_a_b"])
    kv, k_pe = kv_full[..., :kv_lora], kv_full[..., kv_lora:]

    cos, sin = rotary_embedding(rope, cfg["max_seq_len"])
    cos_s = cos[:S][None, :, None, :]
    sin_s = sin[:S][None, :, None, :]
    q_pe = q_pe * cos_s + rotate_half(q_pe) * sin_s
    k_pe_u = k_pe[:, :, None, :]
    k_pe_u = k_pe_u * cos_s + rotate_half(k_pe_u) * sin_s
    k_pe = k_pe_u[:, :, 0, :]

    wkv_b = params["wkv_b_w"].reshape(nh, nope + vdim, kv_lora)
    q_nope = jnp.einsum("bshd,hdc->bshc", q_nope, wkv_b[:, :nope])
    kv = rms(kv, params["kv_norm_w"])
    scores = (jnp.einsum("bshc,btc->bsht", q_nope, kv)
              + jnp.einsum("bshr,btr->bsht", q_pe, k_pe)) / math.sqrt(qk_head_dim)
    mask = jnp.where(jnp.arange(S)[None, :, None, None]
                     < jnp.arange(S)[None, None, None, :], -jnp.inf, 0.0)
    scores = scores + mask
    scores = jax.nn.softmax(scores, axis=-1)
    out = jnp.einsum("bsht,btc->bshc", scores, kv)
    out = jnp.einsum("bshc,hdc->bshd", out, wkv_b[:, -vdim:])
    out = out.reshape(bs, S, nh * vdim)
    return lin(out, params["wo_w"], params["wo_b"])


# ----------------------------------------------------------------------------
# Deterministic parameter construction + driver
# ----------------------------------------------------------------------------
def init_params(key, cfg):
    hidden = cfg["hidden_size"]
    nh = cfg["num_attention_heads"]
    q_lora = cfg["q_lora_rank"]
    kv_lora = cfg["kv_lora_rank"]
    nope = cfg["qk_nope_head_dim"]
    rope = cfg["qk_rope_head_dim"]
    vdim = cfg["v_head_dim"]
    qk_head_dim = nope + rope

    ks = jax.random.split(key, 10)
    s = 0.05
    return {
        "wq_a_w": s * jax.random.normal(ks[0], (q_lora, hidden), jnp.float32),
        "wq_a_b": s * jax.random.normal(ks[1], (q_lora,), jnp.float32),
        "q_norm_w": jnp.ones((q_lora,), jnp.float32),
        "wq_b_w": s * jax.random.normal(ks[2], (nh * qk_head_dim, q_lora), jnp.float32),
        "wq_b_b": s * jax.random.normal(ks[3], (nh * qk_head_dim,), jnp.float32),
        "wkv_a_w": s * jax.random.normal(ks[4], (kv_lora + rope, hidden), jnp.float32),
        "wkv_a_b": s * jax.random.normal(ks[5], (kv_lora + rope,), jnp.float32),
        "kv_norm_w": jnp.ones((kv_lora,), jnp.float32),
        "wkv_b_w": s * jax.random.normal(ks[6], (nh * (nope + vdim), kv_lora), jnp.float32),
        "wo_w": s * jax.random.normal(ks[7], (hidden, nh * vdim), jnp.float32),
        "wo_b": s * jax.random.normal(ks[8], (hidden,), jnp.float32),
    }


if __name__ == "__main__":
    cfg = dict(
        hidden_size=32,
        num_attention_heads=2,
        q_lora_rank=16,
        kv_lora_rank=16,
        qk_nope_head_dim=16,
        qk_rope_head_dim=8,
        v_head_dim=16,
        max_seq_len=16,
    )
    bs, seq_len = 2, 8

    key = jax.random.PRNGKey(0)
    k_x, k_p = jax.random.split(key)
    x = jax.random.normal(k_x, (bs, seq_len, cfg["hidden_size"]), jnp.float32)
    params = init_params(k_p, cfg)
    prepped = prepare_params(params, cfg)      # one-time weight layout / bf16 prep

    fwd = jax.jit(lambda xx, pp: mla_forward(xx, pp, cfg))
    out = jax.block_until_ready(fwd(x, prepped))
    ref = jax.block_until_ready(mla_reference(x, params, cfg))

    assert out.shape == (bs, seq_len, cfg["hidden_size"])
    err = float(jnp.max(jnp.abs(out - ref)))
    # bf16 MXU operands + f32 accumulation -> tolerance loosened vs pure f32
    assert err < 2e-2, f"Pallas output mismatch vs f32 reference: {err}"

    print("KERNEL_OK")
</pallas_src>

<mosaic_0001>
module attributes {stable_mosaic.version = 11 : i64} {
  func.func @_wkv_a_kernel(%arg0: i32, %arg1: i32, %arg2: memref<16x32xbf16, #tpu.memory_space<vmem>>, %arg3: memref<32x24xbf16, #tpu.memory_space<vmem>>, %arg4: memref<1x24xf32, #tpu.memory_space<vmem>>, %arg5: memref<1x16xf32, #tpu.memory_space<vmem>>, %arg6: memref<16x8xf32, #tpu.memory_space<vmem>>, %arg7: memref<16x8xf32, #tpu.memory_space<vmem>>, %arg8: memref<16x24xbf16, #tpu.memory_space<vmem>>, %arg9: memref<16x24xf32, #tpu.memory_space<vmem>>) attributes {dimension_semantics = [#tpu.dimension_semantics<parallel>, #tpu.dimension_semantics<arbitrary>], iteration_bounds = array<i64: 1, 1>, scalar_prefetch = 0 : i64, scratch_operands = 1 : i64, tpu.core_type = #tpu.core_type<tc>, window_params = [{transform_indices = @transform_0, window_bounds = array<i64: 16, 32>}, {transform_indices = @transform_1, window_bounds = array<i64: 32, 24>}, {pipeline_mode = #tpu.pipeline_mode<synchronous>, transform_indices = @transform_2, window_bounds = array<i64: 1, 24>}, {pipeline_mode = #tpu.pipeline_mode<synchronous>, transform_indices = @transform_3, window_bounds = array<i64: 1, 16>}, {transform_indices = @transform_4, window_bounds = array<i64: 16, 8>}, {transform_indices = @transform_5, window_bounds = array<i64: 16, 8>}, {transform_indices = @transform_6, window_bounds = array<i64: 16, 24>}]} {
    %c0_i32 = arith.constant 0 : i32
    %0 = arith.cmpi eq, %arg1, %c0_i32 : i32
    %1 = arith.extui %0 : i1 to i32
    %c0_i32_0 = arith.constant 0 : i32
    %2 = arith.cmpi ne, %1, %c0_i32_0 : i32
    scf.if %2 {
      %cst_10 = arith.constant 0.000000e+00 : f32
      %12 = vector.broadcast %cst_10 : f32 to vector<16x24xf32>
      %c0_11 = arith.constant 0 : index
      %c0_12 = arith.constant 0 : index
      %13 = vector.load %arg9[%c0_11, %c0_12] : memref<16x24xf32, #tpu.memory_space<vmem>>, vector<16x24xf32>
      tpu.vector_store %arg9[%c0_11, %c0_12], %12 {strides = array<i32>} : memref<16x24xf32, #tpu.memory_space<vmem>>, vector<16x24xf32>,
    } else {
    }
    %c0 = arith.constant 0 : index
    %c0_1 = arith.constant 0 : index
    %3 = vector.load %arg9[%c0, %c0_1] : memref<16x24xf32, #tpu.memory_space<vmem>>, vector<16x24xf32>
    %c0_2 = arith.constant 0 : index
    %c0_3 = arith.constant 0 : index
    %4 = vector.load %arg2[%c0_2, %c0_3] : memref<16x32xbf16, #tpu.memory_space<vmem>>, vector<16x32xbf16>
    %c0_4 = arith.constant 0 : index
    %c0_5 = arith.constant 0 : index
    %5 = vector.load %arg3[%c0_4, %c0_5] : memref<32x24xbf16, #tpu.memory_space<vmem>>, vector<32x24xbf16>
    %cst = arith.constant dense<0.000000e+00> : vector<16x24xf32>
    %6 = tpu.matmul %4, %5, %cst {dimension_numbers = #tpu.dot_dimension_numbers<[1], [0], [0], [1], [0, 0, 1, 1], [], []>} : vector<16x32xbf16>, vector<32x24xbf16>, vector<16x24xf32> -> vector<16x24xf32>
    %7 = arith.addf %3, %6 : vector<16x24xf32>
    %c0_6 = arith.constant 0 : index
    %c0_7 = arith.constant 0 : index
    %8 = vector.load %arg9[%c0_6, %c0_7] : memref<16x24xf32, #tpu.memory_space<vmem>>, vector<16x24xf32>
    tpu.vector_store %arg9[%c0_6, %c0_7], %7 {strides = array<i32>} : memref<16x24xf32, #tpu.memory_space<vmem>>, vector<16x24xf32>,
    %c0_i32_8 = arith.constant 0 : i32
    %9 = arith.cmpi eq, %arg1, %c0_i32_8 : i32
    %10 = arith.extui %9 : i1 to i32
    %c0_i32_9 = arith.constant 0 : i32
    %11 = arith.cmpi ne, %10, %c0_i32_9 : i32
    scf.if %11 {
      %c0_10 = arith.constant 0 : index
      %c0_11 = arith.constant 0 : index
      %12 = vector.load %arg9[%c0_10, %c0_11] : memref<16x24xf32, #tpu.memory_space<vmem>>, vector<16x24xf32>
      %c0_12 = arith.constant 0 : index
      %c0_13 = arith.constant 0 : index
      %13 = vector.load %arg4[%c0_12, %c0_13] : memref<1x24xf32, #tpu.memory_space<vmem>>, vector<1x24xf32>
      %14 = vector.broadcast %13 : vector<1x24xf32> to vector<16x24xf32>
      %15 = arith.addf %12, %14 : vector<16x24xf32>
      %16 = vector.extract_strided_slice %15 {offsets = [0, 0], sizes = [16, 16], strides = [1, 1]} : vector<16x24xf32> to vector<16x16xf32>
      %17 = arith.mulf %16, %16 : vector<16x16xf32>
      %cst_14 = arith.constant dense<0.000000e+00> : vector<16xf32>
      %18 = vector.multi_reduction <add>, %17, %cst_14 [1] : vector<16x16xf32> to vector<16xf32>
      %19 = vector.shape_cast %18 : vector<16xf32> to vector<16x1xf32>
      %cst_15 = arith.constant 1.600000e+01 : f32
      %20 = vector.broadcast %cst_15 : f32 to vector<16x1xf32>
      %21 = arith.divf %19, %20 : vector<16x1xf32>
      %c0_16 = arith.constant 0 : index
      %c0_17 = arith.constant 0 : index
      %22 = vector.load %arg5[%c0_16, %c0_17] : memref<1x16xf32, #tpu.memory_space<vmem>>, vector<1x16xf32>
      %cst_18 = arith.constant 9.99999997E-7 : f32
      %23 = vector.broadcast %cst_18 : f32 to vector<16x1xf32>
      %24 = arith.addf %21, %23 : vector<16x1xf32>
      %25 = math.rsqrt %24 : vector<16x1xf32>
      %26 = vector.broadcast %25 : vector<16x1xf32> to vector<16x16xf32>
      %27 = arith.mulf %16, %26 : vector<16x16xf32>
      %28 = vector.broadcast %22 : vector<1x16xf32> to vector<16x16xf32>
      %29 = arith.mulf %28, %27 : vector<16x16xf32>
      %30 = vector.extract_strided_slice %15 {offsets = [0, 16], sizes = [16, 8], strides = [1, 1]} : vector<16x24xf32> to vector<16x8xf32>
      %c0_19 = arith.constant 0 : index
      %c0_20 = arith.constant 0 : index
      %31 = vector.load %arg6[%c0_19, %c0_20] : memref<16x8xf32, #tpu.memory_space<vmem>>, vector<16x8xf32>
      %32 = arith.mulf %30, %31 : vector<16x8xf32>
      %33 = vector.extract_strided_slice %30 {offsets = [0, 4], sizes = [16, 4], strides = [1, 1]} : vector<16x8xf32> to vector<16x4xf32>
      %cst_21 = arith.constant 0.000000e+00 : f32
      %34 = vector.broadcast %cst_21 : f32 to vector<16x4xf32>
      %35 = arith.subf %34, %33 : vector<16x4xf32>
      %36 = vector.extract_strided_slice %30 {offsets = [0, 0], sizes = [16, 4], strides = [1, 1]} : vector<16x8xf32> to vector<16x4xf32>
      %37 = tpu.concatenate %35, %36 in 1 : vector<16x4xf32>, vector<16x4xf32> -> vector<16x8xf32>
      %c0_22 = arith.constant 0 : index
      %c0_23 = arith.constant 0 : index
      %38 = vector.load %arg7[%c0_22, %c0_23] : memref<16x8xf32, #tpu.memory_space<vmem>>, vector<16x8xf32>
      %39 = arith.mulf %37, %38 : vector<16x8xf32>
      %40 = arith.addf %32, %39 : vector<16x8xf32>
      %41 = tpu.concatenate %29, %40 in 1 : vector<16x16xf32>, vector<16x8xf32> -> vector<16x24xf32>
      %42 = arith.truncf %41 : vector<16x24xf32> to vector<16x24xbf16>
      %c0_24 = arith.constant 0 : index
      %c0_25 = arith.constant 0 : index
      %43 = vector.load %arg8[%c0_24, %c0_25] : memref<16x24xbf16, #tpu.memory_space<vmem>>, vector<16x24xbf16>
      tpu.vector_store %arg8[%c0_24, %c0_25], %42 {strides = array<i32>} : memref<16x24xbf16, #tpu.memory_space<vmem>>, vector<16x24xbf16>,
    } else {
    }
    return
  }
  func.func @transform_0(%arg0: i32, %arg1: i32) -> (i32, i32) {
    %c0_i32 = arith.constant 0 : i32
    return %arg0, %arg1 : i32, i32
  }
  func.func @transform_1(%arg0: i32, %arg1: i32) -> (i32, i32) {
    %c0_i32 = arith.constant 0 : i32
    %c0_i32_0 = arith.constant 0 : i32
    return %arg1, %c0_i32 : i32, i32
  }
  func.func @transform_2(%arg0: i32, %arg1: i32) -> (i32, i32) {
    %c0_i32 = arith.constant 0 : i32
    %c0_i32_0 = arith.constant 0 : i32
    %c0_i32_1 = arith.constant 0 : i32
    return %c0_i32, %c0_i32_0 : i32, i32
  }
  func.func @transform_3(%arg0: i32, %arg1: i32) -> (i32, i32) {
    %c0_i32 = arith.constant 0 : i32
    %c0_i32_0 = arith.constant 0 : i32
    %c0_i32_1 = arith.constant 0 : i32
    return %c0_i32, %c0_i32_0 : i32, i32
  }
  func.func @transform_4(%arg0: i32, %arg1: i32) -> (i32, i32) {
    %c0_i32 = arith.constant 0 : i32
    %c0_i32_0 = arith.constant 0 : i32
    return %arg0, %c0_i32 : i32, i32
  }
  func.func @transform_5(%arg0: i32, %arg1: i32) -> (i32, i32) {
    %c0_i32 = arith.constant 0 : i32
    %c0_i32_0 = arith.constant 0 : i32
    return %arg0, %c0_i32 : i32, i32
  }
  func.func @transform_6(%arg0: i32, %arg1: i32) -> (i32, i32) {
    %c0_i32 = arith.constant 0 : i32
    %c0_i32_0 = arith.constant 0 : i32
    return %arg0, %c0_i32 : i32, i32
  }
}

module attributes {stable_mosaic.version = 11 : i64} {
  func.func @_linear_rmsnorm_kernel(%arg0: i32, %arg1: i32, %arg2: memref<16x32xbf16, #tpu.memory_space<vmem>>, %arg3: memref<32x16xbf16, #tpu.memory_space<vmem>>, %arg4: memref<1x16xf32, #tpu.memory_space<vmem>>, %arg5: memref<1x16xf32, #tpu.memory_space<vmem>>, %arg6: memref<16x16xbf16, #tpu.memory_space<vmem>>, %arg7: memref<16x16xf32, #tpu.memory_space<vmem>>) attributes {dimension_semantics = [#tpu.dimension_semantics<parallel>, #tpu.dimension_semantics<arbitrary>], iteration_bounds = array<i64: 1, 1>, scalar_prefetch = 0 : i64, scratch_operands = 1 : i64, tpu.core_type = #tpu.core_type<tc>, window_params = [{transform_indices = @transform_0, window_bounds = array<i64: 16, 32>}, {transform_indices = @transform_1, window_bounds = array<i64: 32, 16>}, {pipeline_mode = #tpu.pipeline_mode<synchronous>, transform_indices = @transform_2, window_bounds = array<i64: 1, 16>}, {pipeline_mode = #tpu.pipeline_mode<synchronous>, transform_indices = @transform_3, window_bounds = array<i64: 1, 16>}, {transform_indices = @transform_4, window_bounds = array<i64: 16, 16>}]} {
    %c0_i32 = arith.constant 0 : i32
    %0 = arith.cmpi eq, %arg1, %c0_i32 : i32
    %1 = arith.extui %0 : i1 to i32
    %c0_i32_0 = arith.constant 0 : i32
    %2 = arith.cmpi ne, %1, %c0_i32_0 : i32
    scf.if %2 {
      %cst_10 = arith.constant 0.000000e+00 : f32
      %12 = vector.broadcast %cst_10 : f32 to vector<16x16xf32>
      %c0_11 = arith.constant 0 : index
      %c0_12 = arith.constant 0 : index
      %13 = vector.load %arg7[%c0_11, %c0_12] : memref<16x16xf32, #tpu.memory_space<vmem>>, vector<16x16xf32>
      tpu.vector_store %arg7[%c0_11, %c0_12], %12 {strides = array<i32>} : memref<16x16xf32, #tpu.memory_space<vmem>>, vector<16x16xf32>,
    } else {
    }
    %c0 = arith.constant 0 : index
    %c0_1 = arith.constant 0 : index
    %3 = vector.load %arg7[%c0, %c0_1] : memref<16x16xf32, #tpu.memory_space<vmem>>, vector<16x16xf32>
    %c0_2 = arith.constant 0 : index
    %c0_3 = arith.constant 0 : index
    %4 = vector.load %arg2[%c0_2, %c0_3] : memref<16x32xbf16, #tpu.memory_space<vmem>>, vector<16x32xbf16>
    %c0_4 = arith.constant 0 : index
    %c0_5 = arith.constant 0 : index
    %5 = vector.load %arg3[%c0_4, %c0_5] : memref<32x16xbf16, #tpu.memory_space<vmem>>, vector<32x16xbf16>
    %cst = arith.constant dense<0.000000e+00> : vector<16x16xf32>
    %6 = tpu.matmul %4, %5, %cst {dimension_numbers = #tpu.dot_dimension_numbers<[1], [0], [0], [1], [0, 0, 1, 1], [], []>} : vector<16x32xbf16>, vector<32x16xbf16>, vector<16x16xf32> -> vector<16x16xf32>
    %7 = arith.addf %3, %6 : vector<16x16xf32>
    %c0_6 = arith.constant 0 : index
    %c0_7 = arith.constant 0 : index
    %8 = vector.load %arg7[%c0_6, %c0_7] : memref<16x16xf32, #tpu.memory_space<vmem>>, vector<16x16xf32>
    tpu.vector_store %arg7[%c0_6, %c0_7], %7 {strides = array<i32>} : memref<16x16xf32, #tpu.memory_space<vmem>>, vector<16x16xf32>,
    %c0_i32_8 = arith.constant 0 : i32
    %9 = arith.cmpi eq, %arg1, %c0_i32_8 : i32
    %10 = arith.extui %9 : i1 to i32
    %c0_i32_9 = arith.constant 0 : i32
    %11 = arith.cmpi ne, %10, %c0_i32_9 : i32
    scf.if %11 {
      %c0_10 = arith.constant 0 : index
      %c0_11 = arith.constant 0 : index
      %12 = vector.load %arg7[%c0_10, %c0_11] : memref<16x16xf32, #tpu.memory_space<vmem>>, vector<16x16xf32>
      %c0_12 = arith.constant 0 : index
      %c0_13 = arith.constant 0 : index
      %13 = vector.load %arg4[%c0_12, %c0_13] : memref<1x16xf32, #tpu.memory_space<vmem>>, vector<1x16xf32>
      %14 = vector.broadcast %13 : vector<1x16xf32> to vector<16x16xf32>
      %15 = arith.addf %12, %14 : vector<16x16xf32>
      %16 = arith.mulf %15, %15 : vector<16x16xf32>
      %cst_14 = arith.constant dense<0.000000e+00> : vector<16xf32>
      %17 = vector.multi_reduction <add>, %16, %cst_14 [1] : vector<16x16xf32> to vector<16xf32>
      %18 = vector.shape_cast %17 : vector<16xf32> to vector<16x1xf32>
      %cst_15 = arith.constant 1.600000e+01 : f32
      %19 = vector.broadcast %cst_15 : f32 to vector<16x1xf32>
      %20 = arith.divf %18, %19 : vector<16x1xf32>
      %c0_16 = arith.constant 0 : index
      %c0_17 = arith.constant 0 : index
      %21 = vector.load %arg5[%c0_16, %c0_17] : memref<1x16xf32, #tpu.memory_space<vmem>>, vector<1x16xf32>
      %cst_18 = arith.constant 9.99999997E-7 : f32
      %22 = vector.broadcast %cst_18 : f32 to vector<16x1xf32>
      %23 = arith.addf %20, %22 : vector<16x1xf32>
      %24 = math.rsqrt %23 : vector<16x1xf32>
      %25 = vector.broadcast %24 : vector<16x1xf32> to vector<16x16xf32>
      %26 = arith.mulf %15, %25 : vector<16x16xf32>
      %27 = vector.broadcast %21 : vector<1x16xf32> to vector<16x16xf32>
      %28 = arith.mulf %27, %26 : vector<16x16xf32>
      %29 = arith.truncf %28 : vector<16x16xf32> to vector<16x16xbf16>
      %c0_19 = arith.constant 0 : index
      %c0_20 = arith.constant 0 : index
      %30 = vector.load %arg6[%c0_19, %c0_20] : memref<16x16xbf16, #tpu.memory_space<vmem>>, vector<16x16xbf16>
      tpu.vector_store %arg6[%c0_19, %c0_20], %29 {strides = array<i32>} : memref<16x16xbf16, #tpu.memory_space<vmem>>, vector<16x16xbf16>,
    } else {
    }
    return
  }
  func.func @transform_0(%arg0: i32, %arg1: i32) -> (i32, i32) {
    %c0_i32 = arith.constant 0 : i32
    return %arg0, %arg1 : i32, i32
  }
  func.func @transform_1(%arg0: i32, %arg1: i32) -> (i32, i32) {
    %c0_i32 = arith.constant 0 : i32
    %c0_i32_0 = arith.constant 0 : i32
    return %arg1, %c0_i32 : i32, i32
  }
  func.func @transform_2(%arg0: i32, %arg1: i32) -> (i32, i32) {
    %c0_i32 = arith.constant 0 : i32
    %c0_i32_0 = arith.constant 0 : i32
    %c0_i32_1 = arith.constant 0 : i32
    return %c0_i32, %c0_i32_0 : i32, i32
  }
  func.func @transform_3(%arg0: i32, %arg1: i32) -> (i32, i32) {
    %c0_i32 = arith.constant 0 : i32
    %c0_i32_0 = arith.constant 0 : i32
    %c0_i32_1 = arith.constant 0 : i32
    return %c0_i32, %c0_i32_0 : i32, i32
  }
  func.func @transform_4(%arg0: i32, %arg1: i32) -> (i32, i32) {
    %c0_i32 = arith.constant 0 : i32
    %c0_i32_0 = arith.constant 0 : i32
    return %arg0, %c0_i32 : i32, i32
  }
}

module attributes {stable_mosaic.version = 11 : i64} {
  func.func @_linear_kernel(%arg0: i32, %arg1: i32, %arg2: i32, %arg3: memref<16x16xbf16, #tpu.memory_space<vmem>>, %arg4: memref<16x48xbf16, #tpu.memory_space<vmem>>, %arg5: memref<1x48xf32, #tpu.memory_space<vmem>>, %arg6: memref<16x48xbf16, #tpu.memory_space<vmem>>, %arg7: memref<16x48xf32, #tpu.memory_space<vmem>>) attributes {dimension_semantics = [#tpu.dimension_semantics<parallel>, #tpu.dimension_semantics<parallel>, #tpu.dimension_semantics<arbitrary>], iteration_bounds = array<i64: 1, 1, 1>, scalar_prefetch = 0 : i64, scratch_operands = 1 : i64, tpu.core_type = #tpu.core_type<tc>, window_params = [{transform_indices = @transform_0, window_bounds = array<i64: 16, 16>}, {transform_indices = @transform_1, window_bounds = array<i64: 16, 48>}, {transform_indices = @transform_2, window_bounds = array<i64: 1, 48>}, {transform_indices = @transform_3, window_bounds = array<i64: 16, 48>}]} {
    %c0_i32 = arith.constant 0 : i32
    %0 = arith.cmpi eq, %arg2, %c0_i32 : i32
    %1 = arith.extui %0 : i1 to i32
    %c0_i32_0 = arith.constant 0 : i32
    %2 = arith.cmpi ne, %1, %c0_i32_0 : i32
    scf.if %2 {
      %cst_10 = arith.constant 0.000000e+00 : f32
      %12 = vector.broadcast %cst_10 : f32 to vector<16x48xf32>
      %c0_11 = arith.constant 0 : index
      %c0_12 = arith.constant 0 : index
      %13 = vector.load %arg7[%c0_11, %c0_12] : memref<16x48xf32, #tpu.memory_space<vmem>>, vector<16x48xf32>
      tpu.vector_store %arg7[%c0_11, %c0_12], %12 {strides = array<i32>} : memref<16x48xf32, #tpu.memory_space<vmem>>, vector<16x48xf32>,
    } else {
    }
    %c0 = arith.constant 0 : index
    %c0_1 = arith.constant 0 : index
    %3 = vector.load %arg7[%c0, %c0_1] : memref<16x48xf32, #tpu.memory_space<vmem>>, vector<16x48xf32>
    %c0_2 = arith.constant 0 : index
    %c0_3 = arith.constant 0 : index
    %4 = vector.load %arg3[%c0_2, %c0_3] : memref<16x16xbf16, #tpu.memory_space<vmem>>, vector<16x16xbf16>
    %c0_4 = arith.constant 0 : index
    %c0_5 = arith.constant 0 : index
    %5 = vector.load %arg4[%c0_4, %c0_5] : memref<16x48xbf16, #tpu.memory_space<vmem>>, vector<16x48xbf16>
    %cst = arith.constant dense<0.000000e+00> : vector<16x48xf32>
    %6 = tpu.matmul %4, %5, %cst {dimension_numbers = #tpu.dot_dimension_numbers<[1], [0], [0], [1], [0, 0, 1, 1], [], []>} : vector<16x16xbf16>, vector<16x48xbf16>, vector<16x48xf32> -> vector<16x48xf32>
    %7 = arith.addf %3, %6 : vector<16x48xf32>
    %c0_6 = arith.constant 0 : index
    %c0_7 = arith.constant 0 : index
    %8 = vector.load %arg7[%c0_6, %c0_7] : memref<16x48xf32, #tpu.memory_space<vmem>>, vector<16x48xf32>
    tpu.vector_store %arg7[%c0_6, %c0_7], %7 {strides = array<i32>} : memref<16x48xf32, #tpu.memory_space<vmem>>, vector<16x48xf32>,
    %c0_i32_8 = arith.constant 0 : i32
    %9 = arith.cmpi eq, %arg2, %c0_i32_8 : i32
    %10 = arith.extui %9 : i1 to i32
    %c0_i32_9 = arith.constant 0 : i32
    %11 = arith.cmpi ne, %10, %c0_i32_9 : i32
    scf.if %11 {
      %c0_10 = arith.constant 0 : index
      %c0_11 = arith.constant 0 : index
      %12 = vector.load %arg7[%c0_10, %c0_11] : memref<16x48xf32, #tpu.memory_space<vmem>>, vector<16x48xf32>
      %c0_12 = arith.constant 0 : index
      %c0_13 = arith.constant 0 : index
      %13 = vector.load %arg5[%c0_12, %c0_13] : memref<1x48xf32, #tpu.memory_space<vmem>>, vector<1x48xf32>
      %14 = vector.broadcast %13 : vector<1x48xf32> to vector<16x48xf32>
      %15 = arith.addf %12, %14 : vector<16x48xf32>
      %16 = arith.truncf %15 : vector<16x48xf32> to vector<16x48xbf16>
      %c0_14 = arith.constant 0 : index
      %c0_15 = arith.constant 0 : index
      %17 = vector.load %arg6[%c0_14, %c0_15] : memref<16x48xbf16, #tpu.memory_space<vmem>>, vector<16x48xbf16>
      tpu.vector_store %arg6[%c0_14, %c0_15], %16 {strides = array<i32>} : memref<16x48xbf16, #tpu.memory_space<vmem>>, vector<16x48xbf16>,
    } else {
    }
    return
  }
  func.func @transform_0(%arg0: i32, %arg1: i32, %arg2: i32) -> (i32, i32) {
    %c0_i32 = arith.constant 0 : i32
    return %arg0, %arg2 : i32, i32
  }
  func.func @transform_1(%arg0: i32, %arg1: i32, %arg2: i32) -> (i32, i32) {
    %c0_i32 = arith.constant 0 : i32
    return %arg2, %arg1 : i32, i32
  }
  func.func @transform_2(%arg0: i32, %arg1: i32, %arg2: i32) -> (i32, i32) {
    %c0_i32 = arith.constant 0 : i32
    %c0_i32_0 = arith.constant 0 : i32
    return %c0_i32, %arg1 : i32, i32
  }
  func.func @transform_3(%arg0: i32, %arg1: i32, %arg2: i32) -> (i32, i32) {
    %c0_i32 = arith.constant 0 : i32
    return %arg0, %arg1 : i32, i32
  }
}

module attributes {stable_mosaic.version = 11 : i64} {
  func.func @_mla_attn_kernel(%arg0: i32, %arg1: i32, %arg2: i32, %arg3: memref<1xi32, #tpu.memory_space<smem>>, %arg4: memref<1xi32, #tpu.memory_space<smem>>, %arg5: memref<1x1x8x24xbf16, #tpu.memory_space<vmem>>, %arg6: memref<1x8x24xbf16, #tpu.memory_space<vmem>>, %arg7: memref<8x8xf32, #tpu.memory_space<vmem>>, %arg8: memref<8x8xf32, #tpu.memory_space<vmem>>, %arg9: memref<1x16x16xbf16, #tpu.memory_space<vmem>>, %arg10: memref<1x16x16xbf16, #tpu.memory_space<vmem>>, %arg11: memref<1x1x8x16xbf16, #tpu.memory_space<vmem>>, %arg12: memref<8x1xf32, #tpu.memory_space<vmem>>, %arg13: memref<8x1xf32, #tpu.memory_space<vmem>>, %arg14: memref<8x16xf32, #tpu.memory_space<vmem>>, %arg15: memref<8x24xbf16, #tpu.memory_space<vmem>>) attributes {dimension_semantics = [#tpu.dimension_semantics<parallel>, #tpu.dimension_semantics<parallel>, #tpu.dimension_semantics<arbitrary>], iteration_bounds = array<i64: 2, 2, 1>, scalar_prefetch = 2 : i64, scratch_operands = 4 : i64, tpu.core_type = #tpu.core_type<tc>, window_params = [{transform_indices = @transform_0, window_bounds = array<i64: 1, 1, 8, 24>}, {transform_indices = @transform_1, window_bounds = array<i64: 1, 8, 24>}, {transform_indices = @transform_2, window_bounds = array<i64: 8, 8>}, {transform_indices = @transform_3, window_bounds = array<i64: 8, 8>}, {transform_indices = @transform_4, window_bounds = array<i64: 1, 16, 16>}, {transform_indices = @transform_5, window_bounds = array<i64: 1, 16, 16>}, {transform_indices = @transform_6, window_bounds = array<i64: 1, 1, 8, 16>}]} {
    %0 = arith.index_cast %arg2 : i32 to index
    %1 = memref.load %arg3[%0] : memref<1xi32, #tpu.memory_space<smem>>
    %2 = arith.index_cast %arg2 : i32 to index
    %3 = memref.load %arg4[%2] : memref<1xi32, #tpu.memory_space<smem>>
    %c0_i32 = arith.constant 0 : i32
    %4 = arith.cmpi eq, %3, %c0_i32 : i32
    %5 = arith.extui %4 : i1 to i32
    %c0_i32_0 = arith.constant 0 : i32
    %6 = arith.cmpi ne, %5, %c0_i32_0 : i32
    scf.if %6 {
      %cst_23 = arith.constant 0xFF800000 : f32
      %49 = vector.broadcast %cst_23 : f32 to vector<8x1xf32>
      %c0_24 = arith.constant 0 : index
      %c0_25 = arith.constant 0 : index
      %50 = vector.load %arg12[%c0_24, %c0_25] : memref<8x1xf32, #tpu.memory_space<vmem>>, vector<8x1xf32>
      tpu.vector_store %arg12[%c0_24, %c0_25], %49 {strides = array<i32>} : memref<8x1xf32, #tpu.memory_space<vmem>>, vector<8x1xf32>,
      %cst_26 = arith.constant 0.000000e+00 : f32
      %51 = vector.broadcast %cst_26 : f32 to vector<8x1xf32>
      %c0_27 = arith.constant 0 : index
      %c0_28 = arith.constant 0 : index
      %52 = vector.load %arg13[%c0_27, %c0_28] : memref<8x1xf32, #tpu.memory_space<vmem>>, vector<8x1xf32>
      tpu.vector_store %arg13[%c0_27, %c0_28], %51 {strides = array<i32>} : memref<8x1xf32, #tpu.memory_space<vmem>>, vector<8x1xf32>,
      %cst_29 = arith.constant 0.000000e+00 : f32
      %53 = vector.broadcast %cst_29 : f32 to vector<8x16xf32>
      %c0_30 = arith.constant 0 : index
      %c0_31 = arith.constant 0 : index
      %54 = vector.load %arg14[%c0_30, %c0_31] : memref<8x16xf32, #tpu.memory_space<vmem>>, vector<8x16xf32>
      tpu.vector_store %arg14[%c0_30, %c0_31], %53 {strides = array<i32>} : memref<8x16xf32, #tpu.memory_space<vmem>>, vector<8x16xf32>,
      %c0_32 = arith.constant 0 : index
      %c0_33 = arith.constant 0 : index
      %c0_34 = arith.constant 0 : index
      %c0_35 = arith.constant 0 : index
      %55 = vector.load %arg5[%c0_32, %c0_33, %c0_34, %c0_35] : memref<1x1x8x24xbf16, #tpu.memory_space<vmem>>, vector<1x1x8x24xbf16>
      %56 = vector.shape_cast %55 : vector<1x1x8x24xbf16> to vector<8x24xbf16>
      %57 = vector.extract_strided_slice %56 {offsets = [0, 0], sizes = [8, 16], strides = [1, 1]} : vector<8x24xbf16> to vector<8x16xbf16>
      %58 = vector.extract_strided_slice %56 {offsets = [0, 16], sizes = [8, 8], strides = [1, 1]} : vector<8x24xbf16> to vector<8x8xbf16>
      %59 = arith.extf %58 : vector<8x8xbf16> to vector<8x8xf32>
      %c0_36 = arith.constant 0 : index
      %c0_37 = arith.constant 0 : index
      %60 = vector.load %arg7[%c0_36, %c0_37] : memref<8x8xf32, #tpu.memory_space<vmem>>, vector<8x8xf32>
      %61 = arith.mulf %59, %60 : vector<8x8xf32>
      %62 = vector.extract_strided_slice %59 {offsets = [0, 4], sizes = [8, 4], strides = [1, 1]} : vector<8x8xf32> to vector<8x4xf32>
      %cst_38 = arith.constant 0.000000e+00 : f32
      %63 = vector.broadcast %cst_38 : f32 to vector<8x4xf32>
      %64 = arith.subf %63, %62 : vector<8x4xf32>
      %65 = vector.extract_strided_slice %59 {offsets = [0, 0], sizes = [8, 4], strides = [1, 1]} : vector<8x8xf32> to vector<8x4xf32>
      %66 = tpu.concatenate %64, %65 in 1 : vector<8x4xf32>, vector<8x4xf32> -> vector<8x8xf32>
      %c0_39 = arith.constant 0 : index
      %c0_40 = arith.constant 0 : index
      %67 = vector.load %arg8[%c0_39, %c0_40] : memref<8x8xf32, #tpu.memory_space<vmem>>, vector<8x8xf32>
      %68 = arith.mulf %66, %67 : vector<8x8xf32>
      %69 = arith.addf %61, %68 : vector<8x8xf32>
      %c0_41 = arith.constant 0 : index
      %c0_42 = arith.constant 0 : index
      %c0_43 = arith.constant 0 : index
      %70 = vector.load %arg9[%c0_41, %c0_42, %c0_43] : memref<1x16x16xbf16, #tpu.memory_space<vmem>>, vector<1x16x16xbf16>
      %71 = vector.shape_cast %70 : vector<1x16x16xbf16> to vector<16x16xbf16>
      %cst_44 = arith.constant dense<0.000000e+00> : vector<8x16xf32>
      %72 = tpu.matmul %57, %71, %cst_44 {dimension_numbers = #tpu.dot_dimension_numbers<[1], [0], [0], [1], [0, 0, 1, 1], [], []>} : vector<8x16xbf16>, vector<16x16xbf16>, vector<8x16xf32> -> vector<8x16xf32>
      %73 = tpu.concatenate %72, %69 in 1 : vector<8x16xf32>, vector<8x8xf32> -> vector<8x24xf32>
      %cst_45 = arith.constant 0.204124153 : f32
      %74 = vector.broadcast %cst_45 : f32 to vector<8x24xf32>
      %75 = arith.mulf %73, %74 : vector<8x24xf32>
      %76 = arith.truncf %75 : vector<8x24xf32> to vector<8x24xbf16>
      %c0_46 = arith.constant 0 : index
      %c0_47 = arith.constant 0 : index
      %77 = vector.load %arg15[%c0_46, %c0_47] : memref<8x24xbf16, #tpu.memory_space<vmem>>, vector<8x24xbf16>
      tpu.vector_store %arg15[%c0_46, %c0_47], %76 {strides = array<i32>} : memref<8x24xbf16, #tpu.memory_space<vmem>>, vector<8x24xbf16>,
    } else {
    }
    %c0 = arith.constant 0 : index
    %c0_1 = arith.constant 0 : index
    %c0_2 = arith.constant 0 : index
    %7 = vector.load %arg6[%c0, %c0_1, %c0_2] : memref<1x8x24xbf16, #tpu.memory_space<vmem>>, vector<1x8x24xbf16>
    %8 = vector.shape_cast %7 : vector<1x8x24xbf16> to vector<8x24xbf16>
    %c0_3 = arith.constant 0 : index
    %c0_4 = arith.constant 0 : index
    %9 = vector.load %arg15[%c0_3, %c0_4] : memref<8x24xbf16, #tpu.memory_space<vmem>>, vector<8x24xbf16>
    %cst = arith.constant dense<0.000000e+00> : vector<8x8xf32>
    %10 = tpu.matmul %9, %8, %cst {dimension_numbers = #tpu.dot_dimension_numbers<[1], [1], [0], [0], [0, 0, 1, 0], [], []>} : vector<8x24xbf16>, vector<8x24xbf16>, vector<8x8xf32> -> vector<8x8xf32>
    %c8_i32 = arith.constant 8 : i32
    %11 = arith.muli %1, %c8_i32 : i32
    %12 = tpu.iota {dimensions = array<i32: 0>} : vector<8x8xi32>
    %13 = vector.broadcast %11 : i32 to vector<8x8xi32>
    %14 = arith.addi %13, %12 : vector<8x8xi32>
    %c8_i32_5 = arith.constant 8 : i32
    %15 = arith.muli %3, %c8_i32_5 : i32
    %16 = tpu.iota {dimensions = array<i32: 1>} : vector<8x8xi32>
    %17 = vector.broadcast %15 : i32 to vector<8x8xi32>
    %18 = arith.addi %17, %16 : vector<8x8xi32>
    %19 = arith.cmpi sgt, %18, %14 : vector<8x8xi32>
    %cst_6 = arith.constant 0xFF800000 : f32
    %20 = vector.broadcast %cst_6 : f32 to vector<8x8xf32>
    %21 = arith.select %19, %20, %10 : vector<8x8xi1>, vector<8x8xf32>
    %c0_7 = arith.constant 0 : index
    %c0_8 = arith.constant 0 : index
    %22 = vector.load %arg12[%c0_7, %c0_8] : memref<8x1xf32, #tpu.memory_space<vmem>>, vector<8x1xf32>
    %cst_9 = arith.constant dense<0xFF800000> : vector<8xf32>
    %23 = vector.multi_reduction <maximumf>, %21, %cst_9 [1] : vector<8x8xf32> to vector<8xf32>
    %24 = vector.shape_cast %23 : vector<8xf32> to vector<8x1xf32>
    %25 = arith.maximumf %22, %24 : vector<8x1xf32>
    %26 = arith.subf %22, %25 : vector<8x1xf32>
    %27 = math.exp %26 : vector<8x1xf32>
    %28 = vector.broadcast %25 : vector<8x1xf32> to vector<8x8xf32>
    %29 = arith.subf %21, %28 : vector<8x8xf32>
    %30 = math.exp %29 : vector<8x8xf32>
    %c0_10 = arith.constant 0 : index
    %c0_11 = arith.constant 0 : index
    %31 = vector.load %arg13[%c0_10, %c0_11] : memref<8x1xf32, #tpu.memory_space<vmem>>, vector<8x1xf32>
    %32 = arith.mulf %27, %31 : vector<8x1xf32>
    %cst_12 = arith.constant dense<0.000000e+00> : vector<8xf32>
    %33 = vector.multi_reduction <add>, %30, %cst_12 [1] : vector<8x8xf32> to vector<8xf32>
    %34 = vector.shape_cast %33 : vector<8xf32> to vector<8x1xf32>
    %35 = arith.addf %32, %34 : vector<8x1xf32>
    %c0_13 = arith.constant 0 : index
    %c0_14 = arith.constant 0 : index
    %36 = vector.load %arg13[%c0_13, %c0_14] : memref<8x1xf32, #tpu.memory_space<vmem>>, vector<8x1xf32>
    tpu.vector_store %arg13[%c0_13, %c0_14], %35 {strides = array<i32>} : memref<8x1xf32, #tpu.memory_space<vmem>>, vector<8x1xf32>,
    %37 = vector.extract_strided_slice %8 {offsets = [0, 0], sizes = [8, 16], strides = [1, 1]} : vector<8x24xbf16> to vector<8x16xbf16>
    %c0_15 = arith.constant 0 : index
    %c0_16 = arith.constant 0 : index
    %38 = vector.load %arg14[%c0_15, %c0_16] : memref<8x16xf32, #tpu.memory_space<vmem>>, vector<8x16xf32>
    %39 = vector.broadcast %27 : vector<8x1xf32> to vector<8x16xf32>
    %40 = arith.mulf %39, %38 : vector<8x16xf32>
    %41 = arith.truncf %30 : vector<8x8xf32> to vector<8x8xbf16>
    %cst_17 = arith.constant dense<0.000000e+00> : vector<8x16xf32>
    %42 = tpu.matmul %41, %37, %cst_17 {dimension_numbers = #tpu.dot_dimension_numbers<[1], [0], [0], [1], [0, 0, 1, 1], [], []>} : vector<8x8xbf16>, vector<8x16xbf16>, vector<8x16xf32> -> vector<8x16xf32>
    %43 = arith.addf %40, %42 : vector<8x16xf32>
    %c0_18 = arith.constant 0 : index
    %c0_19 = arith.constant 0 : index
    %44 = vector.load %arg14[%c0_18, %c0_19] : memref<8x16xf32, #tpu.memory_space<vmem>>, vector<8x16xf32>
    tpu.vector_store %arg14[%c0_18, %c0_19], %43 {strides = array<i32>} : memref<8x16xf32, #tpu.memory_space<vmem>>, vector<8x16xf32>,
    %c0_20 = arith.constant 0 : index
    %c0_21 = arith.constant 0 : index
    %45 = vector.load %arg12[%c0_20, %c0_21] : memref<8x1xf32, #tpu.memory_space<vmem>>, vector<8x1xf32>
    tpu.vector_store %arg12[%c0_20, %c0_21], %25 {strides = array<i32>} : memref<8x1xf32, #tpu.memory_space<vmem>>, vector<8x1xf32>,
    %46 = arith.cmpi eq, %3, %1 : i32
    %47 = arith.extui %46 : i1 to i32
    %c0_i32_22 = arith.constant 0 : i32
    %48 = arith.cmpi ne, %47, %c0_i32_22 : i32
    scf.if %48 {
      %c0_23 = arith.constant 0 : index
      %c0_24 = arith.constant 0 : index
      %49 = vector.load %arg13[%c0_23, %c0_24] : memref<8x1xf32, #tpu.memory_space<vmem>>, vector<8x1xf32>
      %50 = tpu.reciprocal %49 {approx = true} : vector<8x1xf32> -> vector<8x1xf32>
      %c0_25 = arith.constant 0 : index
      %c0_26 = arith.constant 0 : index
      %51 = vector.load %arg14[%c0_25, %c0_26] : memref<8x16xf32, #tpu.memory_space<vmem>>, vector<8x16xf32>
      %52 = vector.broadcast %50 : vector<8x1xf32> to vector<8x16xf32>
      %53 = arith.mulf %51, %52 : vector<8x16xf32>
      %c0_27 = arith.constant 0 : index
      %c0_28 = arith.constant 0 : index
      %c0_29 = arith.constant 0 : index
      %54 = vector.load %arg10[%c0_27, %c0_28, %c0_29] : memref<1x16x16xbf16, #tpu.memory_space<vmem>>, vector<1x16x16xbf16>
      %55 = vector.shape_cast %54 : vector<1x16x16xbf16> to vector<16x16xbf16>
      %56 = arith.truncf %53 : vector<8x16xf32> to vector<8x16xbf16>
      %cst_30 = arith.constant dense<0.000000e+00> : vector<8x16xf32>
      %57 = tpu.matmul %56, %55, %cst_30 {dimension_numbers = #tpu.dot_dimension_numbers<[1], [0], [0], [1], [0, 0, 1, 1], [], []>} : vector<8x16xbf16>, vector<16x16xbf16>, vector<8x16xf32> -> vector<8x16xf32>
      %58 = arith.truncf %57 : vector<8x16xf32> to vector<8x16xbf16>
      %c0_31 = arith.constant 0 : index
      %c0_32 = arith.constant 0 : index
      %c0_33 = arith.constant 0 : index
      %c0_34 = arith.constant 0 : index
      %59 = vector.load %arg11[%c0_31, %c0_32, %c0_33, %c0_34] : memref<1x1x8x16xbf16, #tpu.memory_space<vmem>>, vector<1x1x8x16xbf16>
      %60 = vector.shape_cast %59 : vector<1x1x8x16xbf16> to vector<8x16xbf16>
      %61 = vector.shape_cast %58 : vector<8x16xbf16> to vector<1x1x8x16xbf16>
      tpu.vector_store %arg11[%c0_31, %c0_32, %c0_33, %c0_34], %61 {strides = array<i32>} : memref<1x1x8x16xbf16, #tpu.memory_space<vmem>>, vector<1x1x8x16xbf16>,
    } else {
    }
    return
  }
  func.func @transform_0(%arg0: i32, %arg1: i32, %arg2: i32, %arg3: memref<1xi32, #tpu.memory_space<smem>>, %arg4: memref<1xi32, #tpu.memory_space<smem>>) -> (i32, i32, i32, i32) {
    %0 = arith.index_cast %arg2 : i32 to index
    %1 = memref.load %arg3[%0] : memref<1xi32, #tpu.memory_space<smem>>
    %c0_i32 = arith.constant 0 : i32
    %c0_i32_0 = arith.constant 0 : i32
    return %arg0, %arg1, %1, %c0_i32 : i32, i32, i32, i32
  }
  func.func @transform_1(%arg0: i32, %arg1: i32, %arg2: i32, %arg3: memref<1xi32, #tpu.memory_space<smem>>, %arg4: memref<1xi32, #tpu.memory_space<smem>>) -> (i32, i32, i32) {
    %0 = arith.index_cast %arg2 : i32 to index
    %1 = memref.load %arg4[%0] : memref<1xi32, #tpu.memory_space<smem>>
    %c0_i32 = arith.constant 0 : i32
    %c0_i32_0 = arith.constant 0 : i32
    return %arg0, %1, %c0_i32 : i32, i32, i32
  }
  func.func @transform_2(%arg0: i32, %arg1: i32, %arg2: i32, %arg3: memref<1xi32, #tpu.memory_space<smem>>, %arg4: memref<1xi32, #tpu.memory_space<smem>>) -> (i32, i32) {
    %0 = arith.index_cast %arg2 : i32 to index
    %1 = memref.load %arg3[%0] : memref<1xi32, #tpu.memory_space<smem>>
    %c0_i32 = arith.constant 0 : i32
    %c0_i32_0 = arith.constant 0 : i32
    return %1, %c0_i32 : i32, i32
  }
  func.func @transform_3(%arg0: i32, %arg1: i32, %arg2: i32, %arg3: memref<1xi32, #tpu.memory_space<smem>>, %arg4: memref<1xi32, #tpu.memory_space<smem>>) -> (i32, i32) {
    %0 = arith.index_cast %arg2 : i32 to index
    %1 = memref.load %arg3[%0] : memref<1xi32, #tpu.memory_space<smem>>
    %c0_i32 = arith.constant 0 : i32
    %c0_i32_0 = arith.constant 0 : i32
    return %1, %c0_i32 : i32, i32
  }
  func.func @transform_4(%arg0: i32, %arg1: i32, %arg2: i32, %arg3: memref<1xi32, #tpu.memory_space<smem>>, %arg4: memref<1xi32, #tpu.memory_space<smem>>) -> (i32, i32, i32) {
    %c0_i32 = arith.constant 0 : i32
    %c0_i32_0 = arith.constant 0 : i32
    %c0_i32_1 = arith.constant 0 : i32
    return %arg1, %c0_i32, %c0_i32_0 : i32, i32, i32
  }
  func.func @transform_5(%arg0: i32, %arg1: i32, %arg2: i32, %arg3: memref<1xi32, #tpu.memory_space<smem>>, %arg4: memref<1xi32, #tpu.memory_space<smem>>) -> (i32, i32, i32) {
    %c0_i32 = arith.constant 0 : i32
    %c0_i32_0 = arith.constant 0 : i32
    %c0_i32_1 = arith.constant 0 : i32
    return %arg1, %c0_i32, %c0_i32_0 : i32, i32, i32
  }
  func.func @transform_6(%arg0: i32, %arg1: i32, %arg2: i32, %arg3: memref<1xi32, #tpu.memory_space<smem>>, %arg4: memref<1xi32, #tpu.memory_space<smem>>) -> (i32, i32, i32, i32) {
    %0 = arith.index_cast %arg2 : i32 to index
    %1 = memref.load %arg3[%0] : memref<1xi32, #tpu.memory_space<smem>>
    %c0_i32 = arith.constant 0 : i32
    %c0_i32_0 = arith.constant 0 : i32
    return %arg0, %arg1, %1, %c0_i32 : i32, i32, i32, i32
  }
}

module attributes {stable_mosaic.version = 11 : i64} {
  func.func @_linear_kernel(%arg0: i32, %arg1: i32, %arg2: i32, %arg3: memref<16x32xbf16, #tpu.memory_space<vmem>>, %arg4: memref<32x32xbf16, #tpu.memory_space<vmem>>, %arg5: memref<1x32xf32, #tpu.memory_space<vmem>>, %arg6: memref<16x32xf32, #tpu.memory_space<vmem>>, %arg7: memref<16x32xf32, #tpu.memory_space<vmem>>) attributes {dimension_semantics = [#tpu.dimension_semantics<parallel>, #tpu.dimension_semantics<parallel>, #tpu.dimension_semantics<arbitrary>], iteration_bounds = array<i64: 1, 1, 1>, scalar_prefetch = 0 : i64, scratch_operands = 1 : i64, tpu.core_type = #tpu.core_type<tc>, window_params = [{transform_indices = @transform_0, window_bounds = array<i64: 16, 32>}, {transform_indices = @transform_1, window_bounds = array<i64: 32, 32>}, {transform_indices = @transform_2, window_bounds = array<i64: 1, 32>}, {transform_indices = @transform_3, window_bounds = array<i64: 16, 32>}]} {
    %c0_i32 = arith.constant 0 : i32
    %0 = arith.cmpi eq, %arg2, %c0_i32 : i32
    %1 = arith.extui %0 : i1 to i32
    %c0_i32_0 = arith.constant 0 : i32
    %2 = arith.cmpi ne, %1, %c0_i32_0 : i32
    scf.if %2 {
      %cst_10 = arith.constant 0.000000e+00 : f32
      %12 = vector.broadcast %cst_10 : f32 to vector<16x32xf32>
      %c0_11 = arith.constant 0 : index
      %c0_12 = arith.constant 0 : index
      %13 = vector.load %arg7[%c0_11, %c0_12] : memref<16x32xf32, #tpu.memory_space<vmem>>, vector<16x32xf32>
      tpu.vector_store %arg7[%c0_11, %c0_12], %12 {strides = array<i32>} : memref<16x32xf32, #tpu.memory_space<vmem>>, vector<16x32xf32>,
    } else {
    }
    %c0 = arith.constant 0 : index
    %c0_1 = arith.constant 0 : index
    %3 = vector.load %arg7[%c0, %c0_1] : memref<16x32xf32, #tpu.memory_space<vmem>>, vector<16x32xf32>
    %c0_2 = arith.constant 0 : index
    %c0_3 = arith.constant 0 : index
    %4 = vector.load %arg3[%c0_2, %c0_3] : memref<16x32xbf16, #tpu.memory_space<vmem>>, vector<16x32xbf16>
    %c0_4 = arith.constant 0 : index
    %c0_5 = arith.constant 0 : index
    %5 = vector.load %arg4[%c0_4, %c0_5] : memref<32x32xbf16, #tpu.memory_space<vmem>>, vector<32x32xbf16>
    %cst = arith.constant dense<0.000000e+00> : vector<16x32xf32>
    %6 = tpu.matmul %4, %5, %cst {dimension_numbers = #tpu.dot_dimension_numbers<[1], [0], [0], [1], [0, 0, 1, 1], [], []>} : vector<16x32xbf16>, vector<32x32xbf16>, vector<16x32xf32> -> vector<16x32xf32>
    %7 = arith.addf %3, %6 : vector<16x32xf32>
    %c0_6 = arith.constant 0 : index
    %c0_7 = arith.constant 0 : index
    %8 = vector.load %arg7[%c0_6, %c0_7] : memref<16x32xf32, #tpu.memory_space<vmem>>, vector<16x32xf32>
    tpu.vector_store %arg7[%c0_6, %c0_7], %7 {strides = array<i32>} : memref<16x32xf32, #tpu.memory_space<vmem>>, vector<16x32xf32>,
    %c0_i32_8 = arith.constant 0 : i32
    %9 = arith.cmpi eq, %arg2, %c0_i32_8 : i32
    %10 = arith.extui %9 : i1 to i32
    %c0_i32_9 = arith.constant 0 : i32
    %11 = arith.cmpi ne, %10, %c0_i32_9 : i32
    scf.if %11 {
      %c0_10 = arith.constant 0 : index
      %c0_11 = arith.constant 0 : index
      %12 = vector.load %arg7[%c0_10, %c0_11] : memref<16x32xf32, #tpu.memory_space<vmem>>, vector<16x32xf32>
      %c0_12 = arith.constant 0 : index
      %c0_13 = arith.constant 0 : index
      %13 = vector.load %arg5[%c0_12, %c0_13] : memref<1x32xf32, #tpu.memory_space<vmem>>, vector<1x32xf32>
      %14 = vector.broadcast %13 : vector<1x32xf32> to vector<16x32xf32>
      %15 = arith.addf %12, %14 : vector<16x32xf32>
      %c0_14 = arith.constant 0 : index
      %c0_15 = arith.constant 0 : index
      %16 = vector.load %arg6[%c0_14, %c0_15] : memref<16x32xf32, #tpu.memory_space<vmem>>, vector<16x32xf32>
      tpu.vector_store %arg6[%c0_14, %c0_15], %15 {strides = array<i32>} : memref<16x32xf32, #tpu.memory_space<vmem>>, vector<16x32xf32>,
    } else {
    }
    return
  }
  func.func @transform_0(%arg0: i32, %arg1: i32, %arg2: i32) -> (i32, i32) {
    %c0_i32 = arith.constant 0 : i32
    return %arg0, %arg2 : i32, i32
  }
  func.func @transform_1(%arg0: i32, %arg1: i32, %arg2: i32) -> (i32, i32) {
    %c0_i32 = arith.constant 0 : i32
    return %arg2, %arg1 : i32, i32
  }
  func.func @transform_2(%arg0: i32, %arg1: i32, %arg2: i32) -> (i32, i32) {
    %c0_i32 = arith.constant 0 : i32
    %c0_i32_0 = arith.constant 0 : i32
    return %c0_i32, %arg1 : i32, i32
  }
  func.func @transform_3(%arg0: i32, %arg1: i32, %arg2: i32) -> (i32, i32) {
    %c0_i32 = arith.constant 0 : i32
    return %arg0, %arg1 : i32, i32
  }
}

</mosaic_0001>

<llo_original>
// kernel: _lambda_.5
$region0: #{_lambda_.5}
  #allocation0 [shape = 'u32[]', space=smem, size = 0x4, offset = 0x4, fixed_abs, tag = 'smem constant byte address 0x4 - core index']
  #allocation1 [shape = 'u32[144,128]{1,0:T(1,128)}', space=vmem, size = 0x12000, scoped, tag = 'internal scratch']
  #allocation2 [shape = 'f32[16,16]{1,0:T(8,128)}', space=vmem, size = 0x2000, scoped, tag = 'scratch operand']
  %s0 = inlined_call_operand.vmem [shape: bf16[16,32], index: 0, kind: input, shape index: {}]
  %s1 = inlined_call_operand.vmem [shape: bf16[32,16], index: 1, kind: input, shape index: {}]
  %s2 = inlined_call_operand.vmem [shape: f32[1,16], index: 2, kind: input, shape index: {}]
  %s3 = inlined_call_operand.vmem [shape: f32[1,16], index: 3, kind: input, shape index: {}]
  %s4 = inlined_call_operand.vmem [shape: bf16[16,16], index: 4, kind: output, shape index: {}]
  %s5 = sld [smem:[#allocation0]]
  $region34: #{_lambda_.5} parent=0
    _
  %s7 = ssub.s32 1, %s5
  %s8 = scalar_select 0, %s7, %s5
  // Predicated region
  $region2: #{_lambda_.5} parent=0 // pred_check
    _
  $region3: #{_lambda_.5} parent=0 // pred_check_branch
    %10 = sbr.rel (0) target = $region5
  $region4: #{_lambda_.5} parent=0 // pred_region
    _
  $region5: #{_lambda_.5} parent=0 // pred_fallthru
    _
  // Predicated region
  $region6: #{_lambda_.5} parent=0 // pred_check
    _
  $region7: #{_lambda_.5} parent=0 // pred_check_branch
    %12 = sbr.rel (0) target = $region9
  $region8: #{_lambda_.5} parent=0 // pred_region
    _
  $region9: #{_lambda_.5} parent=0 // pred_fallthru
    _
  // Predicated region
  $region10: #{_lambda_.5} parent=0 // pred_check
    _
  $region11: #{_lambda_.5} parent=0 // pred_check_branch
    %14 = sbr.rel (0) target = $region13
  $region12: #{_lambda_.5} parent=0 // pred_region
    _
  $region13: #{_lambda_.5} parent=0 // pred_fallthru
    _
  // Predicated region
  $region14: #{_lambda_.5} parent=0 // pred_check
    _
  $region15: #{_lambda_.5} parent=0 // pred_check_branch
    %16 = sbr.rel (0) target = $region17
  $region16: #{_lambda_.5} parent=0 // pred_region
    _
  $region17: #{_lambda_.5} parent=0 // pred_fallthru
    _
  %p18 = scmp.eq.s32.totalorder 0, 0
  // Predicated region
  $region18: #{_lambda_.5} parent=0 // pred_check
    %p19 = pneg %p18
  $region19: #{_lambda_.5} parent=0 // pred_check_branch
    %21 = sbr.rel (%p19) target = $region21
  $region20: #{_lambda_.5} parent=0 // pred_region
    %vm22 = vcmask 130048
    %23 = vst.msk [vmem:[#allocation2] sm:$0xff] %vm22, 0.0
    %24 = vst.msk [vmem:[#allocation2 + $0x8] sm:$0xff] %vm22, 0.0
  $region21: #{_lambda_.5} parent=0 // pred_fallthru
    _
  %v25 = vld [vmem:[#allocation2] sm:$0xff]
  %v26 = vld [vmem:[#allocation2 + $0x8] sm:$0xff]
  %v27 = vld [vmem:[%s0] sm:$0xf]
  %v28 = vld [vmem:[%s0 + $0x4] sm:$0xf]
  %v29 = vld [vmem:[%s1] sm:$0xf]
  %v30 = vld [vmem:[%s1 + $0x4] sm:$0xf]
  %v31 = vld [vmem:[%s1 + $0x8] sm:$0xf]
  %v32 = vld [vmem:[%s1 + $0xc] sm:$0xf]
  %v35 = vunpack.c.l.b16 %v27
  %v36 = vunpack.c.l.b16 %v28
  %v37 = vpack.c.b16 %v36, %v35
  %v42 = vunpack.c.l.b16 %v29
  %v43 = vunpack.c.l.b16 %v30
  %v44 = vunpack.c.l.b16 %v31
  %v45 = vunpack.c.l.b16 %v32
  %v46 = vpack.c.b16 %v43, %v42
  %v47 = vpack.c.b16 %v45, %v44
  %vm50 = vcmask 261120
  %v52 = vsel %vm50, %v37, 0
  %54 = vmatprep.subr.bf16.mxu0 0
  %55 = vmatpush1.bf16.msra.mxu0 %v46
  %56 = vmatprep.subr.bf16.mxu0 0
  %57 = vmatpush1.bf16.msra.mxu0 %v47
  %58 = vmatprep.subr.bf16.mxu0 0
  %59 = vmatpush1.bf16.msra.mxu0 0
  %60 = vmatprep.subr.bf16.mxu0 0
  %61 = vmatpush1.bf16.msra.mxu0 0
  %62 = vmatprep.subr.bf16.mxu0 0
  %63 = vmatpush1.bf16.msra.mxu0 0
  %64 = vmatprep.subr.bf16.mxu0 0
  %65 = vmatpush1.bf16.msra.mxu0 0
  %66 = vmatprep.subr.bf16.mxu0 0
  %67 = vmatpush1.bf16.msra.mxu0 0
  %68 = vmatprep.subr.bf16.mxu0 0
  %69 = vmatpush1.bf16.msra.mxu0 0
  %70 = vmatprep.subr.bf16.mxu0 0
  %71 = vmatpush1.bf16.msra.mxu0 0
  %72 = vmatprep.subr.bf16.mxu0 0
  %73 = vmatpush1.bf16.msra.mxu0 0
  %74 = vmatprep.subr.bf16.mxu0 0
  %75 = vmatpush1.bf16.msra.mxu0 0
  %76 = vmatprep.subr.bf16.mxu0 0
  %77 = vmatpush1.bf16.msra.mxu0 0
  %78 = vmatprep.subr.bf16.mxu0 0
  %79 = vmatpush1.bf16.msra.mxu0 0
  %80 = vmatprep.subr.bf16.mxu0 0
  %81 = vmatpush1.bf16.msra.mxu0 0
  %82 = vmatprep.subr.bf16.mxu0 0
  %83 = vmatpush1.bf16.msra.mxu0 0
  %84 = vmatprep.subr.bf16.mxu0 0
  %85 = vmatpush1.bf16.msra.mxu0 0
  %86 = vmatprep.mubr.bf16.mxu0 0
  %87 = vmatmul.mubr.bf16.gmra.mrb[0].mxu0 %v52
  %v88 = vpop.f32.mrb[0].mxu0
  %v89 = vadd.f32 0.0, %v88
  %v90 = vpop.f32.mrb[0].mxu0
  %v91 = vpop.f32.mrb[0].mxu0
  %v92 = vadd.f32 0.0, %v91
  %v93 = vpop.f32.mrb[0].mxu0
  %94 = vdwg.mxu0
  %v95 = vadd.f32 %v25, %v89
  %v96 = vadd.f32 %v26, %v92
  %vm97 = vcmask 130048
  %98 = vst.msk [vmem:[#allocation2] sm:$0xff] %vm97, %v95
  %99 = vst.msk [vmem:[#allocation2 + $0x8] sm:$0xff] %vm97, %v96
  // Predicated region
  $region22: #{_lambda_.5} parent=0 // pred_check
    %p100 = pneg %p18
  $region23: #{_lambda_.5} parent=0 // pred_check_branch
    %102 = sbr.rel (%p100) target = $region25
  $region24: #{_lambda_.5} parent=0 // pred_region
    %v103 = vld [vmem:[#allocation2] sm:$0xff]
    %v104 = vld [vmem:[#allocation2 + $0x8] sm:$0xff]
    %v105 = vld [vmem:[%s2] sm:$0x1]
    %v107 = vlaneseq
    %v108 = vshrl.u32 %v107, 7
    %v109 = vsub.s32 0, %v108
    %v110 = vrot.slane %v105, %v109
    %v112 = vadd.f32 %v103, %v110
    %v113 = vadd.f32 %v104, %v110
    %v114 = vmul.f32 %v112, %v112
    %v115 = vmul.f32 %v113, %v113
    %v116 = vsel %vm97, %v114, 0.0
    %117 = vadd.xlane.f32.xlu0 %v116
    %v118 = vpop.xlane.xlu0 %117
    %v119 = vsel %vm97, %v115, 0.0
    %120 = vadd.xlane.f32.xlu0 %v119
    %v121 = vpop.xlane.xlu0 %120
    %v122 = vrcp.pop 16.0
    %v123 = vmul.f32 %v118, %v122
    %v124 = vmul.f32 %v121, %v122
    %v125 = vld [vmem:[%s3] sm:$0x1]
    %v126 = vadd.f32 %v123, 1e-06
    %v127 = vadd.f32 %v124, 1e-06
    %v128 = vrsqrt.pop %v126
    %v129 = vrsqrt.pop %v127
    %v130 = vmul.f32 %v112, %v128
    %v131 = vmul.f32 %v113, %v129
    %v133 = vlaneseq
    %v134 = vshrl.u32 %v133, 7
    %v135 = vsub.s32 0, %v134
    %v136 = vrot.slane %v125, %v135
    %v138 = vmul.f32 %v136, %v130
    %v139 = vmul.f32 %v136, %v131
    %v140 = vpack.c.bf16 %v139, %v138
    %v142 = vunpack.c.l.b16 %v140
    %v143 = vunpack.c.h.b16 %v140
    %v144 = vpack.c.b16 %v142, %v142
    %v145 = vpack.c.b16 %v143, %v143
    %vm148 = vcmask 125952
    %149 = vst.msk [vmem:[%s4] sm:$0xf] %vm148, %v144
    %150 = vst.msk [vmem:[%s4 + $0x4] sm:$0xf] %vm148, %v145
  $region25: #{_lambda_.5} parent=0 // pred_fallthru
    _
  // Predicated region
  $region26: #{_lambda_.5} parent=0 // pred_check
    _
  $region27: #{_lambda_.5} parent=0 // pred_check_branch
    %152 = sbr.rel (0) target = $region29
  $region28: #{_lambda_.5} parent=0 // pred_region
    _
  $region29: #{_lambda_.5} parent=0 // pred_fallthru
    _
  // Predicated region
  $region30: #{_lambda_.5} parent=0 // pred_check
    _
  $region31: #{_lambda_.5} parent=0 // pred_check_branch
    %154 = sbr.rel (0) target = $region33
  $region32: #{_lambda_.5} parent=0 // pred_region
    _
  $region33: #{_lambda_.5} parent=0 // pred_fallthru
    _

// kernel: _lambda_.7
$region0: #{_lambda_.7}
  #allocation0 [shape = 'u32[]', space=smem, size = 0x4, offset = 0x4, fixed_abs, tag = 'smem constant byte address 0x4 - core index']
  #allocation1 [shape = 'u32[144,128]{1,0:T(1,128)}', space=vmem, size = 0x12000, scoped, tag = 'internal scratch']
  #allocation2 [shape = 'f32[16,24]{1,0:T(8,128)}', space=vmem, size = 0x2000, scoped, tag = 'scratch operand']
  %s0 = inlined_call_operand.vmem [shape: bf16[16,32], index: 0, kind: input, shape index: {}]
  %s1 = inlined_call_operand.vmem [shape: bf16[32,24], index: 1, kind: input, shape index: {}]
  %s2 = inlined_call_operand.vmem [shape: f32[1,24], index: 2, kind: input, shape index: {}]
  %s3 = inlined_call_operand.vmem [shape: f32[1,16], index: 3, kind: input, shape index: {}]
  %s4 = inlined_call_operand.vmem [shape: f32[16,8], index: 4, kind: input, shape index: {}]
  %s5 = inlined_call_operand.vmem [shape: f32[16,8], index: 5, kind: input, shape index: {}]
  %s6 = inlined_call_operand.vmem [shape: bf16[16,24], index: 6, kind: output, shape index: {}]
  %s7 = sld [smem:[#allocation0]]
  $region42: #{_lambda_.7} parent=0
    _
  %s9 = ssub.s32 1, %s7
  %s10 = scalar_select 0, %s9, %s7
  // Predicated region
  $region2: #{_lambda_.7} parent=0 // pred_check
    _
  $region3: #{_lambda_.7} parent=0 // pred_check_branch
    %12 = sbr.rel (0) target = $region5
  $region4: #{_lambda_.7} parent=0 // pred_region
    _
  $region5: #{_lambda_.7} parent=0 // pred_fallthru
    _
  // Predicated region
  $region6: #{_lambda_.7} parent=0 // pred_check
    _
  $region7: #{_lambda_.7} parent=0 // pred_check_branch
    %14 = sbr.rel (0) target = $region9
  $region8: #{_lambda_.7} parent=0 // pred_region
    _
  $region9: #{_lambda_.7} parent=0 // pred_fallthru
    _
  // Predicated region
  $region10: #{_lambda_.7} parent=0 // pred_check
    _
  $region11: #{_lambda_.7} parent=0 // pred_check_branch
    %16 = sbr.rel (0) target = $region13
  $region12: #{_lambda_.7} parent=0 // pred_region
    _
  $region13: #{_lambda_.7} parent=0 // pred_fallthru
    _
  // Predicated region
  $region14: #{_lambda_.7} parent=0 // pred_check
    _
  $region15: #{_lambda_.7} parent=0 // pred_check_branch
    %18 = sbr.rel (0) target = $region17
  $region16: #{_lambda_.7} parent=0 // pred_region
    _
  $region17: #{_lambda_.7} parent=0 // pred_fallthru
    _
  // Predicated region
  $region18: #{_lambda_.7} parent=0 // pred_check
    _
  $region19: #{_lambda_.7} parent=0 // pred_check_branch
    %20 = sbr.rel (0) target = $region21
  $region20: #{_lambda_.7} parent=0 // pred_region
    _
  $region21: #{_lambda_.7} parent=0 // pred_fallthru
    _
  // Predicated region
  $region22: #{_lambda_.7} parent=0 // pred_check
    _
  $region23: #{_lambda_.7} parent=0 // pred_check_branch
    %22 = sbr.rel (0) target = $region25
  $region24: #{_lambda_.7} parent=0 // pred_region
    _
  $region25: #{_lambda_.7} parent=0 // pred_fallthru
    _
  %p24 = scmp.eq.s32.totalorder 0, 0
  // Predicated region
  $region26: #{_lambda_.7} parent=0 // pred_check
    %p25 = pneg %p24
  $region27: #{_lambda_.7} parent=0 // pred_check_branch
    %27 = sbr.rel (%p25) target = $region29
  $region28: #{_lambda_.7} parent=0 // pred_region
    %vm28 = vcmask 195584
    %29 = vst.msk [vmem:[#allocation2] sm:$0xff] %vm28, 0.0
    %30 = vst.msk [vmem:[#allocation2 + $0x8] sm:$0xff] %vm28, 0.0
  $region29: #{_lambda_.7} parent=0 // pred_fallthru
    _
  %v31 = vld [vmem:[#allocation2] sm:$0xff]
  %v32 = vld [vmem:[#allocation2 + $0x8] sm:$0xff]
  %v33 = vld [vmem:[%s0] sm:$0xf]
  %v34 = vld [vmem:[%s0 + $0x4] sm:$0xf]
  %v35 = vld [vmem:[%s1] sm:$0xf]
  %v36 = vld [vmem:[%s1 + $0x4] sm:$0xf]
  %v37 = vld [vmem:[%s1 + $0x8] sm:$0xf]
  %v38 = vld [vmem:[%s1 + $0xc] sm:$0xf]
  %v41 = vunpack.c.l.b16 %v33
  %v42 = vunpack.c.l.b16 %v34
  %v43 = vpack.c.b16 %v42, %v41
  %v48 = vunpack.c.l.b16 %v35
  %v49 = vunpack.c.l.b16 %v36
  %v50 = vunpack.c.l.b16 %v37
  %v51 = vunpack.c.l.b16 %v38
  %v52 = vpack.c.b16 %v49, %v48
  %v53 = vpack.c.b16 %v51, %v50
  %vm56 = vcmask 261120
  %v58 = vsel %vm56, %v43, 0
  %60 = vmatprep.subr.bf16.mxu0 0
  %61 = vmatpush1.bf16.msra.mxu0 %v52
  %62 = vmatprep.subr.bf16.mxu0 0
  %63 = vmatpush1.bf16.msra.mxu0 %v53
  %64 = vmatprep.subr.bf16.mxu0 0
  %65 = vmatpush1.bf16.msra.mxu0 0
  %66 = vmatprep.subr.bf16.mxu0 0
  %67 = vmatpush1.bf16.msra.mxu0 0
  %68 = vmatprep.subr.bf16.mxu0 0
  %69 = vmatpush1.bf16.msra.mxu0 0
  %70 = vmatprep.subr.bf16.mxu0 0
  %71 = vmatpush1.bf16.msra.mxu0 0
  %72 = vmatprep.subr.bf16.mxu0 0
  %73 = vmatpush1.bf16.msra.mxu0 0
  %74 = vmatprep.subr.bf16.mxu0 0
  %75 = vmatpush1.bf16.msra.mxu0 0
  %76 = vmatprep.subr.bf16.mxu0 0
  %77 = vmatpush1.bf16.msra.mxu0 0
  %78 = vmatprep.subr.bf16.mxu0 0
  %79 = vmatpush1.bf16.msra.mxu0 0
  %80 = vmatprep.subr.bf16.mxu0 0
  %81 = vmatpush1.bf16.msra.mxu0 0
  %82 = vmatprep.subr.bf16.mxu0 0
  %83 = vmatpush1.bf16.msra.mxu0 0
  %84 = vmatprep.subr.bf16.mxu0 0
  %85 = vmatpush1.bf16.msra.mxu0 0
  %86 = vmatprep.subr.bf16.mxu0 0
  %87 = vmatpush1.bf16.msra.mxu0 0
  %88 = vmatprep.subr.bf16.mxu0 0
  %89 = vmatpush1.bf16.msra.mxu0 0
  %90 = vmatprep.subr.bf16.mxu0 0
  %91 = vmatpush1.bf16.msra.mxu0 0
  %92 = vmatprep.mubr.bf16.mxu0 0
  %93 = vmatmul.mubr.bf16.gmra.mrb[0].mxu0 %v58
  %v94 = vpop.f32.mrb[0].mxu0
  %v95 = vadd.f32 0.0, %v94
  %v96 = vpop.f32.mrb[0].mxu0
  %v97 = vpop.f32.mrb[0].mxu0
  %v98 = vadd.f32 0.0, %v97
  %v99 = vpop.f32.mrb[0].mxu0
  %100 = vdwg.mxu0
  %v101 = vadd.f32 %v31, %v95
  %v102 = vadd.f32 %v32, %v98
  %vm103 = vcmask 195584
  %104 = vst.msk [vmem:[#allocation2] sm:$0xff] %vm103, %v101
  %105 = vst.msk [vmem:[#allocation2 + $0x8] sm:$0xff] %vm103, %v102
  // Predicated region
  $region30: #{_lambda_.7} parent=0 // pred_check
    %p106 = pneg %p24
  $region31: #{_lambda_.7} parent=0 // pred_check_branch
    %108 = sbr.rel (%p106) target = $region33
  $region32: #{_lambda_.7} parent=0 // pred_region
    %v109 = vld [vmem:[#allocation2] sm:$0xff]
    %v110 = vld [vmem:[#allocation2 + $0x8] sm:$0xff]
    %v111 = vld [vmem:[%s2] sm:$0x1]
    %v113 = vlaneseq
    %v114 = vshrl.u32 %v113, 7
    %v115 = vsub.s32 0, %v114
    %v116 = vrot.slane %v111, %v115
    %v118 = vadd.f32 %v109, %v116
    %v119 = vadd.f32 %v110, %v116
    %v120 = vmul.f32 %v118, %v118
    %v121 = vmul.f32 %v119, %v119
    %vm122 = vcmask 130048
    %v123 = vsel %vm122, %v120, 0.0
    %124 = vadd.xlane.f32.xlu0 %v123
    %v125 = vpop.xlane.xlu0 %124
    %v126 = vsel %vm122, %v121, 0.0
    %127 = vadd.xlane.f32.xlu0 %v126
    %v128 = vpop.xlane.xlu0 %127
    %v129 = vrcp.pop 16.0
    %v130 = vmul.f32 %v125, %v129
    %v131 = vmul.f32 %v128, %v129
    %v132 = vld [vmem:[%s3] sm:$0x1]
    %v133 = vadd.f32 %v130, 1e-06
    %v134 = vadd.f32 %v131, 1e-06
    %v135 = vrsqrt.pop %v133
    %v136 = vrsqrt.pop %v134
    %v137 = vmul.f32 %v118, %v135
    %v138 = vmul.f32 %v119, %v136
    %v140 = vlaneseq
    %v141 = vshrl.u32 %v140, 7
    %v142 = vsub.s32 0, %v141
    %v143 = vrot.slane %v132, %v142
    %v145 = vmul.f32 %v143, %v137
    %v146 = vmul.f32 %v143, %v138
    %v147 = vld [vmem:[%s4] sm:$0xff]
    %v148 = vld [vmem:[%s4 + $0x8] sm:$0xff]
    %151 = vrot.lane.b32.xlu0 %v147, 16
    %v152 = vpop.permute.xlu0 %151
    %153 = vrot.lane.b32.xlu0 %v148, 16
    %v154 = vpop.permute.xlu0 %153
    %v157 = vmul.f32 %v118, %v152
    %v158 = vmul.f32 %v119, %v154
    %v159 = vsub.f32 0.0, %v118
    %v160 = vsub.f32 0.0, %v119
    %163 = vrot.lane.b32.xlu0 %v159, 108
    %v164 = vpop.permute.xlu0 %163
    %165 = vrot.lane.b32.xlu0 %v160, 108
    %v166 = vpop.permute.xlu0 %165
    %171 = vrot.lane.b32.xlu0 %v118, 116
    %v172 = vpop.permute.xlu0 %171
    %173 = vrot.lane.b32.xlu0 %v119, 116
    %v174 = vpop.permute.xlu0 %173
    %vm177 = vcmask 31744
    %v178 = vsel %vm177, %v164, %v172
    %v179 = vsel %vm177, %v166, %v174
    %v180 = vld [vmem:[%s5] sm:$0xff]
    %v181 = vld [vmem:[%s5 + $0x8] sm:$0xff]
    %v182 = vmul.f32 %v178, %v180
    %v183 = vmul.f32 %v179, %v181
    %186 = vrot.lane.b32.xlu0 %v182, 16
    %v187 = vpop.permute.xlu0 %186
    %188 = vrot.lane.b32.xlu0 %v183, 16
    %v189 = vpop.permute.xlu0 %188
    %v192 = vadd.f32 %v157, %v187
    %v193 = vadd.f32 %v158, %v189
    %v194 = vsel %vm122, %v145, %v192
    %v195 = vsel %vm122, %v146, %v193
    %v196 = vpack.c.bf16 %v195, %v194
    %v198 = vunpack.c.l.b16 %v196
    %v199 = vunpack.c.h.b16 %v196
    %v200 = vpack.c.b16 %v198, %v198
    %v201 = vpack.c.b16 %v199, %v199
    %vm204 = vcmask 191488
    %205 = vst.msk [vmem:[%s6] sm:$0xf] %vm204, %v200
    %206 = vst.msk [vmem:[%s6 + $0x4] sm:$0xf] %vm204, %v201
  $region33: #{_lambda_.7} parent=0 // pred_fallthru
    _
  // Predicated region
  $region34: #{_lambda_.7} parent=0 // pred_check
    _
  $region35: #{_lambda_.7} parent=0 // pred_check_branch
    %208 = sbr.rel (0) target = $region37
  $region36: #{_lambda_.7} parent=0 // pred_region
    _
  $region37: #{_lambda_.7} parent=0 // pred_fallthru
    _
  // Predicated region
  $region38: #{_lambda_.7} parent=0 // pred_check
    _
  $region39: #{_lambda_.7} parent=0 // pred_check_branch
    %210 = sbr.rel (0) target = $region41
  $region40: #{_lambda_.7} parent=0 // pred_region
    _
  $region41: #{_lambda_.7} parent=0 // pred_fallthru
    _

// kernel: _lambda_.6
$region0: #{_lambda_.6}
  #allocation0 [shape = 'u32[]', space=smem, size = 0x4, offset = 0x4, fixed_abs, tag = 'smem constant byte address 0x4 - core index']
  #allocation1 [shape = 'u32[144,128]{1,0:T(1,128)}', space=vmem, size = 0x12000, scoped, tag = 'internal scratch']
  #allocation2 [shape = 'f32[16,48]{1,0:T(8,128)}', space=vmem, size = 0x2000, scoped, tag = 'scratch operand']
  %s0 = inlined_call_operand.vmem [shape: bf16[16,16], index: 0, kind: input, shape index: {}]
  %s1 = inlined_call_operand.vmem [shape: bf16[16,48], index: 1, kind: input, shape index: {}]
  %s2 = inlined_call_operand.vmem [shape: f32[1,48], index: 2, kind: input, shape index: {}]
  %s3 = inlined_call_operand.vmem [shape: bf16[16,48], index: 3, kind: output, shape index: {}]
  %s4 = sld [smem:[#allocation0]]
  $region30: #{_lambda_.6} parent=0
    _
  %s6 = ssub.s32 1, %s4
  %s7 = scalar_select 0, %s6, %s4
  // Predicated region
  $region2: #{_lambda_.6} parent=0 // pred_check
    _
  $region3: #{_lambda_.6} parent=0 // pred_check_branch
    %9 = sbr.rel (0) target = $region5
  $region4: #{_lambda_.6} parent=0 // pred_region
    _
  $region5: #{_lambda_.6} parent=0 // pred_fallthru
    _
  // Predicated region
  $region6: #{_lambda_.6} parent=0 // pred_check
    _
  $region7: #{_lambda_.6} parent=0 // pred_check_branch
    %11 = sbr.rel (0) target = $region9
  $region8: #{_lambda_.6} parent=0 // pred_region
    _
  $region9: #{_lambda_.6} parent=0 // pred_fallthru
    _
  // Predicated region
  $region10: #{_lambda_.6} parent=0 // pred_check
    _
  $region11: #{_lambda_.6} parent=0 // pred_check_branch
    %13 = sbr.rel (0) target = $region13
  $region12: #{_lambda_.6} parent=0 // pred_region
    _
  $region13: #{_lambda_.6} parent=0 // pred_fallthru
    _
  %p15 = scmp.eq.s32.totalorder 0, 0
  // Predicated region
  $region14: #{_lambda_.6} parent=0 // pred_check
    %p16 = pneg %p15
  $region15: #{_lambda_.6} parent=0 // pred_check_branch
    %18 = sbr.rel (%p16) target = $region17
  $region16: #{_lambda_.6} parent=0 // pred_region
    %vm19 = vcmask 392192
    %20 = vst.msk [vmem:[#allocation2] sm:$0xff] %vm19, 0.0
    %21 = vst.msk [vmem:[#allocation2 + $0x8] sm:$0xff] %vm19, 0.0
  $region17: #{_lambda_.6} parent=0 // pred_fallthru
    _
  %v22 = vld [vmem:[#allocation2] sm:$0xff]
  %v23 = vld [vmem:[#allocation2 + $0x8] sm:$0xff]
  %v24 = vld [vmem:[%s0] sm:$0xf]
  %v25 = vld [vmem:[%s0 + $0x4] sm:$0xf]
  %v26 = vld [vmem:[%s1] sm:$0xf]
  %v27 = vld [vmem:[%s1 + $0x4] sm:$0xf]
  %v30 = vunpack.c.l.b16 %v24
  %v31 = vunpack.c.l.b16 %v25
  %v32 = vpack.c.b16 %v31, %v30
  %v35 = vunpack.c.l.b16 %v26
  %v36 = vunpack.c.l.b16 %v27
  %v37 = vpack.c.b16 %v36, %v35
  %vm39 = vcmask 130048
  %v41 = vsel %vm39, %v32, 0
  %43 = vmatprep.subr.bf16.mxu0 0
  %44 = vmatpush1.bf16.msra.mxu0 %v37
  %45 = vmatprep.subr.bf16.mxu0 0
  %46 = vmatpush1.bf16.msra.mxu0 0
  %47 = vmatprep.subr.bf16.mxu0 0
  %48 = vmatpush1.bf16.msra.mxu0 0
  %49 = vmatprep.subr.bf16.mxu0 0
  %50 = vmatpush1.bf16.msra.mxu0 0
  %51 = vmatprep.subr.bf16.mxu0 0
  %52 = vmatpush1.bf16.msra.mxu0 0
  %53 = vmatprep.subr.bf16.mxu0 0
  %54 = vmatpush1.bf16.msra.mxu0 0
  %55 = vmatprep.subr.bf16.mxu0 0
  %56 = vmatpush1.bf16.msra.mxu0 0
  %57 = vmatprep.subr.bf16.mxu0 0
  %58 = vmatpush1.bf16.msra.mxu0 0
  %59 = vmatprep.subr.bf16.mxu0 0
  %60 = vmatpush1.bf16.msra.mxu0 0
  %61 = vmatprep.subr.bf16.mxu0 0
  %62 = vmatpush1.bf16.msra.mxu0 0
  %63 = vmatprep.subr.bf16.mxu0 0
  %64 = vmatpush1.bf16.msra.mxu0 0
  %65 = vmatprep.subr.bf16.mxu0 0
  %66 = vmatpush1.bf16.msra.mxu0 0
  %67 = vmatprep.subr.bf16.mxu0 0
  %68 = vmatpush1.bf16.msra.mxu0 0
  %69 = vmatprep.subr.bf16.mxu0 0
  %70 = vmatpush1.bf16.msra.mxu0 0
  %71 = vmatprep.subr.bf16.mxu0 0
  %72 = vmatpush1.bf16.msra.mxu0 0
  %73 = vmatprep.subr.bf16.mxu0 0
  %74 = vmatpush1.bf16.msra.mxu0 0
  %75 = vmatprep.mubr.bf16.mxu0 0
  %76 = vmatmul.mubr.bf16.gmra.mrb[0].mxu0 %v41
  %v77 = vpop.f32.mrb[0].mxu0
  %v78 = vadd.f32 0.0, %v77
  %v79 = vpop.f32.mrb[0].mxu0
  %v80 = vpop.f32.mrb[0].mxu0
  %v81 = vadd.f32 0.0, %v80
  %v82 = vpop.f32.mrb[0].mxu0
  %83 = vdwg.mxu0
  %v84 = vadd.f32 %v22, %v78
  %v85 = vadd.f32 %v23, %v81
  %vm86 = vcmask 392192
  %87 = vst.msk [vmem:[#allocation2] sm:$0xff] %vm86, %v84
  %88 = vst.msk [vmem:[#allocation2 + $0x8] sm:$0xff] %vm86, %v85
  // Predicated region
  $region18: #{_lambda_.6} parent=0 // pred_check
    %p89 = pneg %p15
  $region19: #{_lambda_.6} parent=0 // pred_check_branch
    %91 = sbr.rel (%p89) target = $region21
  $region20: #{_lambda_.6} parent=0 // pred_region
    %v92 = vld [vmem:[#allocation2] sm:$0xff]
    %v93 = vld [vmem:[#allocation2 + $0x8] sm:$0xff]
    %v94 = vld [vmem:[%s2] sm:$0x1]
    %v96 = vlaneseq
    %v97 = vshrl.u32 %v96, 7
    %v98 = vsub.s32 0, %v97
    %v99 = vrot.slane %v94, %v98
    %v101 = vadd.f32 %v92, %v99
    %v102 = vadd.f32 %v93, %v99
    %v103 = vpack.c.bf16 %v102, %v101
    %v105 = vunpack.c.l.b16 %v103
    %v106 = vunpack.c.h.b16 %v103
    %v107 = vpack.c.b16 %v105, %v105
    %v108 = vpack.c.b16 %v106, %v106
    %vm111 = vcmask 388096
    %112 = vst.msk [vmem:[%s3] sm:$0xf] %vm111, %v107
    %113 = vst.msk [vmem:[%s3 + $0x4] sm:$0xf] %vm111, %v108
  $region21: #{_lambda_.6} parent=0 // pred_fallthru
    _
  // Predicated region
  $region22: #{_lambda_.6} parent=0 // pred_check
    _
  $region23: #{_lambda_.6} parent=0 // pred_check_branch
    %115 = sbr.rel (0) target = $region25
  $region24: #{_lambda_.6} parent=0 // pred_region
    _
  $region25: #{_lambda_.6} parent=0 // pred_fallthru
    _
  // Predicated region
  $region26: #{_lambda_.6} parent=0 // pred_check
    _
  $region27: #{_lambda_.6} parent=0 // pred_check_branch
    %117 = sbr.rel (0) target = $region29
  $region28: #{_lambda_.6} parent=0 // pred_region
    _
  $region29: #{_lambda_.6} parent=0 // pred_fallthru
    _

// kernel: _lambda_.8
$region0: #{_lambda_.8}
  #allocation0 [shape = 'u32[]', space=smem, size = 0x4, offset = 0x4, fixed_abs, tag = 'smem constant byte address 0x4 - core index']
  #allocation1 [shape = 'u32[144,128]{1,0:T(1,128)}', space=vmem, size = 0x12000, scoped, tag = 'internal scratch']
  #allocation2 [shape = 'f32[8,1]{1,0:T(8,128)}', space=vmem, size = 0x1000, scoped, tag = 'scratch operand']
  #allocation3 [shape = 'f32[8,1]{1,0:T(8,128)}', space=vmem, size = 0x1000, scoped, tag = 'scratch operand']
  #allocation4 [shape = 'f32[8,16]{1,0:T(8,128)}', space=vmem, size = 0x1000, scoped, tag = 'scratch operand']
  #allocation5 [shape = 'bf16[8,24]{1,0:T(8,128)(2,1)}', space=vmem, size = 0x800, scoped, tag = 'scratch operand']
  #allocation6 [shape = 's32[1]{0}', space=sflag, size = 0x4, scoped, tag = 'scoped memory for _lambda_.8']
  #allocation7 [shape = 's32[1]{0:T(128)S(6)}', space=smem, size = 0x200, scoped, tag = 'prefetched SMEM operand 0']
  #allocation8 [shape = 's32[1]{0:T(128)S(6)}', space=smem, size = 0x200, scoped, tag = 'prefetched SMEM operand 1']
  %s0 = inlined_call_operand.<no memory space> [shape: s32[1], index: 0, kind: input, shape index: {}, may-alias: {0,1}]
  %s1 = inlined_call_operand.<no memory space> [shape: s32[1], index: 1, kind: input, shape index: {}, may-alias: {0,1}]
  %s2 = inlined_call_operand.vmem [shape: bf16[2,2,8,24], index: 2, kind: input, shape index: {}]
  %s3 = inlined_call_operand.vmem [shape: bf16[2,8,24], index: 3, kind: input, shape index: {}]
  %s4 = inlined_call_operand.vmem [shape: f32[8,8], index: 4, kind: input, shape index: {}]
  %s5 = inlined_call_operand.vmem [shape: f32[8,8], index: 5, kind: input, shape index: {}]
  %s6 = inlined_call_operand.vmem [shape: bf16[2,16,16], index: 6, kind: input, shape index: {}]
  %s7 = inlined_call_operand.vmem [shape: bf16[2,16,16], index: 7, kind: input, shape index: {}]
  %s8 = inlined_call_operand.vmem [shape: bf16[2,2,8,16], index: 8, kind: output, shape index: {}]
  %s9 = sld [smem:[#allocation0]]
  $region65: #{_lambda_.8} parent=0
    _
  %s11 = ssub.s32 1, %s9
  %s12 = scalar_select 0, %s11, %s9
  %13 = sst [smem:[#allocation7]] %s0
  %14 = sst [smem:[#allocation8]] %s1
  loop: start=0, step=1, limit=6
  $region2: #{_lambda_.8} parent=0 // loop_pre_header
    _
  $region3: #{_lambda_.8} parent=0 // loop_header
    %s16 = sphi 0, %s20
    %p17 = scmp.ge.s32.totalorder %s16, 6
    %s23 = sphi 0, %s42
    %s24 = sphi 0, %s38
    %s25 = sphi 0, %s34
    %s26 = sphi 0, %s23
    %s27 = sphi 0, %s24
    %s28 = sphi 0, %s25
    %s29 = sphi 0, %s26
    %s30 = sphi 0, %s27
    %s31 = sphi 0, %s28
    %s51 = sphi 0, %s53
    %s54 = sphi 0, %s51
    %s55 = sphi 0, %s54
    %s71 = sphi 0, %s55
    %s81 = sphi 0, %s83
    %s84 = sphi 0, %s81
    %s85 = sphi 0, %s84
    %s101 = sphi 0, %s85
    %s109 = sphi 0, %s111
    %s112 = sphi 0, %s109
    %s113 = sphi 0, %s112
    %s129 = sphi 0, %s113
    %s137 = sphi 0, %s139
    %s140 = sphi 0, %s137
    %s141 = sphi 0, %s140
    %s157 = sphi 0, %s141
    %s163 = sphi 0, %s165
    %s166 = sphi 0, %s163
    %s167 = sphi 0, %s166
    %s183 = sphi 0, %s167
    %s189 = sphi 0, %s191
    %s192 = sphi 0, %s189
    %s193 = sphi 0, %s192
    %s209 = sphi 0, %s193
    %s221 = sphi 0, %s223
    %s224 = sphi 0, %s221
    %s225 = sphi 0, %s224
    %s241 = sphi 0, %s225
  $region4: #{_lambda_.8} parent=0 // loop_header_branch
    %19 = sbr.rel (%p17) target = $region8
  $region5: #{_lambda_.8} parent=0 // loop_body
    %s21 = ssub.s32 %s16, 1
    %s22 = ssub.s32 %s16, 2
    %s32 = sadd.s32 1, %s25
    %p33 = scmp.ge.s32.totalorder %s32, 1
    %s34 = scalar_select %p33, 0, %s32
    %s35 = sadd.s32 1, %s24
    %s36 = scalar_select %p33, %s35, %s24
    %p37 = scmp.ge.s32.totalorder %s36, 2
    %s38 = scalar_select %p37, 0, %s36
    %s39 = sadd.s32 1, %s23
    %s40 = scalar_select %p37, %s39, %s23
    %p41 = scmp.ge.s32.totalorder %s40, 2
    %s42 = scalar_select %p41, 0, %s40
    %s43 = sld [smem:[#allocation7 + %s25]]
    %s44 = sld [smem:[#allocation7 + %s34]]
    %s45 = ssub.s32 %s23, %s42
    %s46 = ssub.s32 %s24, %s38
    %s47 = sor.u32 %s45, %s46
    %s48 = ssub.s32 %s43, %s44
    %s49 = sor.u32 %s47, %s48
    %p50 = scmp.eq.s32.totalorder %s49, 0
    %s52 = sadd.s32 %s51, 1
    %s53 = scalar_select %p50, %s51, %s52
    %p56 = pneg %p50
    %p57 = scmp.eq.s32.totalorder %s16, 3
    %p58 = por %p56, %p57
    %p59 = scmp.ne.s32.totalorder %s51, %s54
    %p60 = scmp.eq.s32.totalorder %s16, 0
    %p61 = por %p59, %p60
    %p62 = scmp.ne.s32.totalorder %s51, %s54
    %p63 = scmp.eq.s32.totalorder %s21, 3
    %p64 = por %p62, %p63
    %p65 = scmp.ne.s32.totalorder %s54, %s55
    %p66 = scmp.eq.s32.totalorder %s21, 0
    %p67 = por %p65, %p66
    %p68 = scmp.ne.s32.totalorder %s54, %s55
    %p69 = scmp.eq.s32.totalorder %s22, 3
    %p70 = por %p68, %p69
    %p72 = scmp.ne.s32.totalorder %s55, %s71
    %p73 = scmp.eq.s32.totalorder %s22, 0
    %p74 = por %p72, %p73
    %s75 = sld [smem:[#allocation8 + %s25]]
    %s76 = sld [smem:[#allocation8 + %s34]]
    %s77 = ssub.s32 %s23, %s42
    %s78 = ssub.s32 %s75, %s76
    %s79 = sor.u32 %s77, %s78
    %p80 = scmp.eq.s32.totalorder %s79, 0
    %s82 = sadd.s32 %s81, 1
    %s83 = scalar_select %p80, %s81, %s82
    %p86 = pneg %p80
    %p87 = scmp.eq.s32.totalorder %s16, 3
    %p88 = por %p86, %p87
    %p89 = scmp.ne.s32.totalorder %s81, %s84
    %p90 = scmp.eq.s32.totalorder %s16, 0
    %p91 = por %p89, %p90
    %p92 = scmp.ne.s32.totalorder %s81, %s84
    %p93 = scmp.eq.s32.totalorder %s21, 3
    %p94 = por %p92, %p93
    %p95 = scmp.ne.s32.totalorder %s84, %s85
    %p96 = scmp.eq.s32.totalorder %s21, 0
    %p97 = por %p95, %p96
    %p98 = scmp.ne.s32.totalorder %s84, %s85
    %p99 = scmp.eq.s32.totalorder %s22, 3
    %p100 = por %p98, %p99
    %p102 = scmp.ne.s32.totalorder %s85, %s101
    %p103 = scmp.eq.s32.totalorder %s22, 0
    %p104 = por %p102, %p103
    %s105 = sld [smem:[#allocation7 + %s25]]
    %s106 = sld [smem:[#allocation7 + %s34]]
    %s107 = ssub.s32 %s105, %s106
    %p108 = scmp.eq.s32.totalorder %s107, 0
    %s110 = sadd.s32 %s109, 1
    %s111 = scalar_select %p108, %s109, %s110
    %p114 = pneg %p108
    %p115 = scmp.eq.s32.totalorder %s16, 3
    %p116 = por %p114, %p115
    %p117 = scmp.ne.s32.totalorder %s109, %s112
    %p118 = scmp.eq.s32.totalorder %s16, 0
    %p119 = por %p117, %p118
    %p120 = scmp.ne.s32.totalorder %s109, %s112
    %p121 = scmp.eq.s32.totalorder %s21, 3
    %p122 = por %p120, %p121
    %p123 = scmp.ne.s32.totalorder %s112, %s113
    %p124 = scmp.eq.s32.totalorder %s21, 0
    %p125 = por %p123, %p124
    %p126 = scmp.ne.s32.totalorder %s112, %s113
    %p127 = scmp.eq.s32.totalorder %s22, 3
    %p128 = por %p126, %p127
    %p130 = scmp.ne.s32.totalorder %s113, %s129
    %p131 = scmp.eq.s32.totalorder %s22, 0
    %p132 = por %p130, %p131
    %s133 = sld [smem:[#allocation7 + %s25]]
    %s134 = sld [smem:[#allocation7 + %s34]]
    %s135 = ssub.s32 %s133, %s134
    %p136 = scmp.eq.s32.totalorder %s135, 0
    %s138 = sadd.s32 %s137, 1
    %s139 = scalar_select %p136, %s137, %s138
    %p142 = pneg %p136
    %p143 = scmp.eq.s32.totalorder %s16, 3
    %p144 = por %p142, %p143
    %p145 = scmp.ne.s32.totalorder %s137, %s140
    %p146 = scmp.eq.s32.totalorder %s16, 0
    %p147 = por %p145, %p146
    %p148 = scmp.ne.s32.totalorder %s137, %s140
    %p149 = scmp.eq.s32.totalorder %s21, 3
    %p150 = por %p148, %p149
    %p151 = scmp.ne.s32.totalorder %s140, %s141
    %p152 = scmp.eq.s32.totalorder %s21, 0
    %p153 = por %p151, %p152
    %p154 = scmp.ne.s32.totalorder %s140, %s141
    %p155 = scmp.eq.s32.totalorder %s22, 3
    %p156 = por %p154, %p155
    %p158 = scmp.ne.s32.totalorder %s141, %s157
    %p159 = scmp.eq.s32.totalorder %s22, 0
    %p160 = por %p158, %p159
    %s161 = ssub.s32 %s24, %s38
    %p162 = scmp.eq.s32.totalorder %s161, 0
    %s164 = sadd.s32 %s163, 1
    %s165 = scalar_select %p162, %s163, %s164
    %p168 = pneg %p162
    %p169 = scmp.eq.s32.totalorder %s16, 3
    %p170 = por %p168, %p169
    %p171 = scmp.ne.s32.totalorder %s163, %s166
    %p172 = scmp.eq.s32.totalorder %s16, 0
    %p173 = por %p171, %p172
    %p174 = scmp.ne.s32.totalorder %s163, %s166
    %p175 = scmp.eq.s32.totalorder %s21, 3
    %p176 = por %p174, %p175
    %p177 = scmp.ne.s32.totalorder %s166, %s167
    %p178 = scmp.eq.s32.totalorder %s21, 0
    %p179 = por %p177, %p178
    %p180 = scmp.ne.s32.totalorder %s166, %s167
    %p181 = scmp.eq.s32.totalorder %s22, 3
    %p182 = por %p180, %p181
    %p184 = scmp.ne.s32.totalorder %s167, %s183
    %p185 = scmp.eq.s32.totalorder %s22, 0
    %p186 = por %p184, %p185
    %s187 = ssub.s32 %s24, %s38
    %p188 = scmp.eq.s32.totalorder %s187, 0
    %s190 = sadd.s32 %s189, 1
    %s191 = scalar_select %p188, %s189, %s190
    %p194 = pneg %p188
    %p195 = scmp.eq.s32.totalorder %s16, 3
    %p196 = por %p194, %p195
    %p197 = scmp.ne.s32.totalorder %s189, %s192
    %p198 = scmp.eq.s32.totalorder %s16, 0
    %p199 = por %p197, %p198
    %p200 = scmp.ne.s32.totalorder %s189, %s192
    %p201 = scmp.eq.s32.totalorder %s21, 3
    %p202 = por %p200, %p201
    %p203 = scmp.ne.s32.totalorder %s192, %s193
    %p204 = scmp.eq.s32.totalorder %s21, 0
    %p205 = por %p203, %p204
    %p206 = scmp.ne.s32.totalorder %s192, %s193
    %p207 = scmp.eq.s32.totalorder %s22, 3
    %p208 = por %p206, %p207
    %p210 = scmp.ne.s32.totalorder %s193, %s209
    %p211 = scmp.eq.s32.totalorder %s22, 0
    %p212 = por %p210, %p211
    %s213 = sld [smem:[#allocation7 + %s25]]
    %s214 = sld [smem:[#allocation7 + %s34]]
    %s215 = ssub.s32 %s23, %s42
    %s216 = ssub.s32 %s24, %s38
    %s217 = sor.u32 %s215, %s216
    %s218 = ssub.s32 %s213, %s214
    %s219 = sor.u32 %s217, %s218
    %p220 = scmp.eq.s32.totalorder %s219, 0
    %s222 = sadd.s32 %s221, 1
    %s223 = scalar_select %p220, %s221, %s222
    %p226 = pneg %p220
    %p227 = scmp.eq.s32.totalorder %s16, 3
    %p228 = por %p226, %p227
    %p229 = scmp.ne.s32.totalorder %s221, %s224
    %p230 = scmp.eq.s32.totalorder %s16, 0
    %p231 = por %p229, %p230
    %p232 = scmp.ne.s32.totalorder %s221, %s224
    %p233 = scmp.eq.s32.totalorder %s21, 3
    %p234 = por %p232, %p233
    %p235 = scmp.ne.s32.totalorder %s224, %s225
    %p236 = scmp.eq.s32.totalorder %s21, 0
    %p237 = por %p235, %p236
    %p238 = scmp.ne.s32.totalorder %s224, %s225
    %p239 = scmp.eq.s32.totalorder %s22, 3
    %p240 = por %p238, %p239
    %p242 = scmp.ne.s32.totalorder %s225, %s241
    %p243 = scmp.eq.s32.totalorder %s22, 0
    %p244 = por %p242, %p243
    %p245 = scmp.le.s32.totalorder 1, %s16
    %p246 = scmp.lt.s32.totalorder %s16, 5
    %p247 = pnand %p245, %p246
    %p248 = pneg %p247
    // Predicated region
    $region9: #{_lambda_.8} parent=5 // pred_check
      _
    $region10: #{_lambda_.8} parent=5 // pred_check_branch
      %250 = sbr.rel (%p247) target = $region12
    $region11: #{_lambda_.8} parent=5 // pred_region
      %s251 = ssub.s32 %s16, 1
      // Predicated region
      $region13: #{_lambda_.8} parent=11 // pred_check
        %p252 = pneg %p125
      $region14: #{_lambda_.8} parent=11 // pred_check_branch
        %254 = sbr.rel (%p252) target = $region16
      $region15: #{_lambda_.8} parent=11 // pred_region
        %s255 = sld [smem:[#allocation7 + %s28]]
        %p256 = scmp.lt.s32.totalorder %s255, 0
        %s257 = scalar_select %p256, %s255, 0
        %s258 = smul.addr %s257, 8
        %s259 = scalar_lea.vmem %s4, %s258
        %s260 = sld [smem:[#allocation7 + %s28]]
      $region16: #{_lambda_.8} parent=11 // pred_fallthru
        _
      // Predicated region
      $region17: #{_lambda_.8} parent=11 // pred_check
        %p261 = pneg %p153
      $region18: #{_lambda_.8} parent=11 // pred_check_branch
        %263 = sbr.rel (%p261) target = $region20
      $region19: #{_lambda_.8} parent=11 // pred_region
        %s264 = sld [smem:[#allocation7 + %s28]]
        %p265 = scmp.lt.s32.totalorder %s264, 0
        %s266 = scalar_select %p265, %s264, 0
        %s267 = smul.addr %s266, 8
        %s268 = scalar_lea.vmem %s5, %s267
        %s269 = sld [smem:[#allocation7 + %s28]]
      $region20: #{_lambda_.8} parent=11 // pred_fallthru
        _
    $region12: #{_lambda_.8} parent=5 // pred_fallthru
      _
    %p270 = scmp.lt.s32.totalorder %s16, 4
    // Predicated region
    $region21: #{_lambda_.8} parent=5 // pred_check
      %p271 = pneg %p270
    $region22: #{_lambda_.8} parent=5 // pred_check_branch
      %273 = sbr.rel (%p271) target = $region24
    $region23: #{_lambda_.8} parent=5 // pred_region
      // Predicated region
      $region25: #{_lambda_.8} parent=23 // pred_check
        %p274 = pneg %p61
      $region26: #{_lambda_.8} parent=23 // pred_check_branch
        %276 = sbr.rel (%p274) target = $region28
      $region27: #{_lambda_.8} parent=23 // pred_region
        %s277 = sld [smem:[#allocation7 + %s25]]
        %p278 = scmp.lt.s32.totalorder %s23, 1
        %s279 = scalar_select %p278, %s23, 1
        %p280 = scmp.lt.s32.totalorder %s24, 1
        %s281 = scalar_select %p280, %s24, 1
        %p282 = scmp.lt.s32.totalorder %s277, 0
        %s283 = scalar_select %p282, %s277, 0
        %s284 = sadd.s32 %s283, %s281
        %s285 = smul.addr %s279, 2
        %s286 = sadd.s32 %s284, %s285
        %s287 = smul.addr %s286, 4
        %s288 = scalar_lea.vmem %s2, %s287
        %s289 = sld [smem:[#allocation7 + %s25]]
      $region28: #{_lambda_.8} parent=23 // pred_fallthru
        _
      // Predicated region
      $region29: #{_lambda_.8} parent=23 // pred_check
        %p290 = pneg %p91
      $region30: #{_lambda_.8} parent=23 // pred_check_branch
        %292 = sbr.rel (%p290) target = $region32
      $region31: #{_lambda_.8} parent=23 // pred_region
        %s293 = sld [smem:[#allocation8 + %s25]]
        %p294 = scmp.lt.s32.totalorder %s23, 1
        %s295 = scalar_select %p294, %s23, 1
        %p296 = scmp.lt.s32.totalorder %s293, 0
        %s297 = scalar_select %p296, %s293, 0
        %s298 = sadd.s32 %s297, %s295
        %s299 = smul.addr %s298, 4
        %s300 = scalar_lea.vmem %s3, %s299
        %s301 = sld [smem:[#allocation8 + %s25]]
      $region32: #{_lambda_.8} parent=23 // pred_fallthru
        _
      // Predicated region
      $region33: #{_lambda_.8} parent=23 // pred_check
        %p302 = pneg %p173
      $region34: #{_lambda_.8} parent=23 // pred_check_branch
        %304 = sbr.rel (%p302) target = $region36
      $region35: #{_lambda_.8} parent=23 // pred_region
        %p305 = scmp.lt.s32.totalorder %s24, 1
        %s306 = scalar_select %p305, %s24, 1
        %s307 = smul.addr %s306, 2
        %s308 = smul.addr %s307, 4
        %s309 = scalar_lea.vmem %s6, %s308
      $region36: #{_lambda_.8} parent=23 // pred_fallthru
        _
      // Predicated region
      $region37: #{_lambda_.8} parent=23 // pred_check
        %p310 = pneg %p199
      $region38: #{_lambda_.8} parent=23 // pred_check_branch
        %312 = sbr.rel (%p310) target = $region40
      $region39: #{_lambda_.8} parent=23 // pred_region
        %p313 = scmp.lt.s32.totalorder %s24, 1
        %s314 = scalar_select %p313, %s24, 1
        %s315 = smul.addr %s314, 2
        %s316 = smul.addr %s315, 4
        %s317 = scalar_lea.vmem %s7, %s316
      $region40: #{_lambda_.8} parent=23 // pred_fallthru
        _
    $region24: #{_lambda_.8} parent=5 // pred_fallthru
      _
    %p318 = scmp.le.s32.totalorder 1, %s16
    %p319 = scmp.lt.s32.totalorder %s16, 5
    %p320 = pnand %p318, %p319
    %p321 = pneg %p320
    // Predicated region
    $region41: #{_lambda_.8} parent=5 // pred_check
      _
    $region42: #{_lambda_.8} parent=5 // pred_check_branch
      %323 = sbr.rel (%p320) target = $region44
    $region43: #{_lambda_.8} parent=5 // pred_region
      %s324 = ssub.s32 %s16, 1
      %s325 = sld [smem:[#allocation7 + %s28]]
      %p326 = scmp.lt.s32.totalorder %s26, 1
      %s327 = scalar_select %p326, %s26, 1
      %p328 = scmp.lt.s32.totalorder %s27, 1
      %s329 = scalar_select %p328, %s27, 1
      %p330 = scmp.lt.s32.totalorder %s325, 0
      %s331 = scalar_select %p330, %s325, 0
      %s332 = sadd.s32 %s331, %s329
      %s333 = smul.addr %s327, 2
      %s334 = sadd.s32 %s332, %s333
      %s335 = smul.addr %s334, 4
      %s336 = scalar_lea.vmem %s2, %s335
      %p337 = pneg %p67
      %p338 = pneg %p64
      %s339 = sld [smem:[#allocation8 + %s28]]
      %p340 = scmp.lt.s32.totalorder %s26, 1
      %s341 = scalar_select %p340, %s26, 1
      %p342 = scmp.lt.s32.totalorder %s339, 0
      %s343 = scalar_select %p342, %s339, 0
      %s344 = sadd.s32 %s343, %s341
      %s345 = smul.addr %s344, 4
      %s346 = scalar_lea.vmem %s3, %s345
      %p347 = pneg %p97
      %p348 = pneg %p94
      %s349 = sld [smem:[#allocation7 + %s28]]
      %p350 = scmp.lt.s32.totalorder %s349, 0
      %s351 = scalar_select %p350, %s349, 0
      %s352 = smul.addr %s351, 8
      %s353 = scalar_lea.vmem %s4, %s352
      %p354 = pneg %p125
      %p355 = pneg %p122
      %s356 = sld [smem:[#allocation7 + %s28]]
      %p357 = scmp.lt.s32.totalorder %s356, 0
      %s358 = scalar_select %p357, %s356, 0
      %s359 = smul.addr %s358, 8
      %s360 = scalar_lea.vmem %s5, %s359
      %p361 = pneg %p153
      %p362 = pneg %p150
      %p363 = scmp.lt.s32.totalorder %s27, 1
      %s364 = scalar_select %p363, %s27, 1
      %s365 = smul.addr %s364, 2
      %s366 = smul.addr %s365, 4
      %s367 = scalar_lea.vmem %s6, %s366
      %p368 = pneg %p179
      %p369 = pneg %p176
      %p370 = scmp.lt.s32.totalorder %s27, 1
      %s371 = scalar_select %p370, %s27, 1
      %s372 = smul.addr %s371, 2
      %s373 = smul.addr %s372, 4
      %s374 = scalar_lea.vmem %s7, %s373
      %p375 = pneg %p205
      %p376 = pneg %p202
      %p377 = pneg %p237
      %p378 = pneg %p234
      %s379 = sld [smem:[#allocation7 + %s28]]
      %p380 = scmp.lt.s32.totalorder %s26, 1
      %s381 = scalar_select %p380, %s26, 1
      %p382 = scmp.lt.s32.totalorder %s27, 1
      %s383 = scalar_select %p382, %s27, 1
      %p384 = scmp.lt.s32.totalorder %s379, 0
      %s385 = scalar_select %p384, %s379, 0
      %s386 = sadd.s32 %s385, %s383
      %s387 = smul.addr %s381, 2
      %s388 = sadd.s32 %s386, %s387
      %s389 = smul.addr %s388, 4
      %s390 = scalar_lea.vmem %s8, %s389
      %s391 = sld [smem:[#allocation7 + %s28]]
      %p392 = scmp.lt.s32.totalorder %s26, 1
      %s393 = scalar_select %p392, %s26, 1
      %p394 = scmp.lt.s32.totalorder %s27, 1
      %s395 = scalar_select %p394, %s27, 1
      %p396 = scmp.lt.s32.totalorder %s391, 0
      %s397 = scalar_select %p396, %s391, 0
      %s398 = sadd.s32 %s397, %s395
      %s399 = smul.addr %s393, 2
      %s400 = sadd.s32 %s398, %s399
      %s401 = smul.addr %s400, 4
      %s402 = scalar_lea.vmem %s2, %s401
      %s403 = sld [smem:[#allocation7 + %s28]]
      %s404 = sld [smem:[#allocation8 + %s28]]
      %p405 = scmp.lt.s32.totalorder %s26, 1
      %s406 = scalar_select %p405, %s26, 1
      %p407 = scmp.lt.s32.totalorder %s404, 0
      %s408 = scalar_select %p407, %s404, 0
      %s409 = sadd.s32 %s408, %s406
      %s410 = smul.addr %s409, 4
      %s411 = scalar_lea.vmem %s3, %s410
      %s412 = sld [smem:[#allocation8 + %s28]]
      %s413 = sld [smem:[#allocation7 + %s28]]
      %p414 = scmp.lt.s32.totalorder %s413, 0
      %s415 = scalar_select %p414, %s413, 0
      %s416 = smul.addr %s415, 8
      %s417 = scalar_lea.vmem %s4, %s416
      %s418 = sld [smem:[#allocation7 + %s28]]
      %s419 = sld [smem:[#allocation7 + %s28]]
      %p420 = scmp.lt.s32.totalorder %s419, 0
      %s421 = scalar_select %p420, %s419, 0
      %s422 = smul.addr %s421, 8
      %s423 = scalar_lea.vmem %s5, %s422
      %s424 = sld [smem:[#allocation7 + %s28]]
      %p425 = scmp.lt.s32.totalorder %s27, 1
      %s426 = scalar_select %p425, %s27, 1
      %s427 = smul.addr %s426, 2
      %s428 = smul.addr %s427, 4
      %s429 = scalar_lea.vmem %s6, %s428
      %p430 = scmp.lt.s32.totalorder %s27, 1
      %s431 = scalar_select %p430, %s27, 1
      %s432 = smul.addr %s431, 2
      %s433 = smul.addr %s432, 4
      %s434 = scalar_lea.vmem %s7, %s433
      %s435 = sld [smem:[#allocation7 + %s28]]
      %p436 = scmp.lt.s32.totalorder %s26, 1
      %s437 = scalar_select %p436, %s26, 1
      %p438 = scmp.lt.s32.totalorder %s27, 1
      %s439 = scalar_select %p438, %s27, 1
      %p440 = scmp.lt.s32.totalorder %s435, 0
      %s441 = scalar_select %p440, %s435, 0
      %s442 = sadd.s32 %s441, %s439
      %s443 = smul.addr %s437, 2
      %s444 = sadd.s32 %s442, %s443
      %s445 = smul.addr %s444, 4
      %s446 = scalar_lea.vmem %s8, %s445
      %s447 = sld [smem:[#allocation7 + %s28]]
      %s449 = sld [smem:[#allocation7 + %s28]]
      %s450 = sld [smem:[#allocation8 + %s28]]
      %p451 = scmp.eq.s32.totalorder %s450, 0
      // Predicated region
      $region45: #{_lambda_.8} parent=43 // pred_check
        %p452 = pneg %p451
      $region46: #{_lambda_.8} parent=43 // pred_check_branch
        %454 = sbr.rel (%p452) target = $region48
      $region47: #{_lambda_.8} parent=43 // pred_region
        %vm455 = vcmask 7168
        %456 = vst.msk [vmem:[#allocation2] sm:$0xff] %vm455, -inf
        %457 = vst.msk [vmem:[#allocation3] sm:$0xff] %vm455, 0.0
        %vm458 = vcmask 130048
        %459 = vst.msk [vmem:[#allocation4] sm:$0xff] %vm458, 0.0
        %v460 = vld [vmem:[%s402] sm:$0xf]
        %v461 = vunpack.c.l.bf16 %v460
        %v462 = vld [vmem:[%s417] sm:$0xff]
        %464 = vrot.lane.b32.xlu0 %v462, 16
        %v465 = vpop.permute.xlu0 %464
        %v467 = vmul.f32 %v461, %v465
        %v468 = vsub.f32 0.0, %v461
        %470 = vrot.lane.b32.xlu0 %v468, 108
        %v471 = vpop.permute.xlu0 %470
        %474 = vrot.lane.b32.xlu0 %v461, 116
        %v475 = vpop.permute.xlu0 %474
        %vm477 = vcmask 31744
        %v478 = vsel %vm477, %v471, %v475
        %v479 = vld [vmem:[%s423] sm:$0xff]
        %v480 = vmul.f32 %v478, %v479
        %482 = vrot.lane.b32.xlu0 %v480, 16
        %v483 = vpop.permute.xlu0 %482
        %v485 = vadd.f32 %v467, %v483
        %v486 = vld [vmem:[%s429] sm:$0xf]
        %v487 = vld [vmem:[%s429 + $0x4] sm:$0xf]
        %v490 = vunpack.c.l.b16 %v486
        %v491 = vunpack.c.l.b16 %v487
        %v492 = vpack.c.b16 %v491, %v490
        %v495 = vsel %vm458, %v460, 0
        %497 = vmatprep.subr.bf16.mxu0 0
        %498 = vmatpush1.bf16.msra.mxu0 %v492
        %499 = vmatprep.subr.bf16.mxu0 0
        %500 = vmatpush1.bf16.msra.mxu0 0
        %501 = vmatprep.subr.bf16.mxu0 0
        %502 = vmatpush1.bf16.msra.mxu0 0
        %503 = vmatprep.subr.bf16.mxu0 0
        %504 = vmatpush1.bf16.msra.mxu0 0
        %505 = vmatprep.subr.bf16.mxu0 0
        %506 = vmatpush1.bf16.msra.mxu0 0
        %507 = vmatprep.subr.bf16.mxu0 0
        %508 = vmatpush1.bf16.msra.mxu0 0
        %509 = vmatprep.subr.bf16.mxu0 0
        %510 = vmatpush1.bf16.msra.mxu0 0
        %511 = vmatprep.subr.bf16.mxu0 0
        %512 = vmatpush1.bf16.msra.mxu0 0
        %513 = vmatprep.subr.bf16.mxu0 0
        %514 = vmatpush1.bf16.msra.mxu0 0
        %515 = vmatprep.subr.bf16.mxu0 0
        %516 = vmatpush1.bf16.msra.mxu0 0
        %517 = vmatprep.subr.bf16.mxu0 0
        %518 = vmatpush1.bf16.msra.mxu0 0
        %519 = vmatprep.subr.bf16.mxu0 0
        %520 = vmatpush1.bf16.msra.mxu0 0
        %521 = vmatprep.subr.bf16.mxu0 0
        %522 = vmatpush1.bf16.msra.mxu0 0
        %523 = vmatprep.subr.bf16.mxu0 0
        %524 = vmatpush1.bf16.msra.mxu0 0
        %525 = vmatprep.subr.bf16.mxu0 0
        %526 = vmatpush1.bf16.msra.mxu0 0
        %527 = vmatprep.subr.bf16.mxu0 0
        %528 = vmatpush1.bf16.msra.mxu0 0
        %529 = vmatprep.mubr.bf16.mxu0 0
        %530 = vmatmul.mubr.bf16.gmra.mrb[0].mxu0 %v495
        %v531 = vpop.f32.mrb[0].mxu0
        %v532 = vadd.f32 0.0, %v531
        %v533 = vpop.f32.mrb[0].mxu0
        %v534 = vpop.f32.mrb[0].mxu0
        %v535 = vpop.f32.mrb[0].mxu0
        %536 = vdwg.mxu0
        %v537 = vsel %vm458, %v532, %v485
        %v538 = vmul.f32 %v537, 0.20412415
        %v539 = vpack.c.bf16 %v538, %v538
        %vm540 = vcmask 191488
        %541 = vst.msk [vmem:[#allocation5] sm:$0xf] %vm540, %v539
      $region48: #{_lambda_.8} parent=43 // pred_fallthru
        _
      %v542 = vld [vmem:[%s411] sm:$0xf]
      %v543 = vld [vmem:[#allocation5] sm:$0xf]
      %vm544 = vcmask 195584
      %v546 = vsel %vm544, %v543, 0
      %v549 = vsel %vm544, %v542, 0
      %551 = vmatprep.subr.bf16.mxu0 0
      %552 = vmatpush1.bf16.xpose.msra.mxu0 %v549
      %553 = vmatprep.subr.bf16.mxu0 0
      %554 = vmatpush1.bf16.xpose.msra.mxu0 0
      %555 = vmatprep.subr.bf16.mxu0 0
      %556 = vmatpush1.bf16.xpose.msra.mxu0 0
      %557 = vmatprep.subr.bf16.mxu0 0
      %558 = vmatpush1.bf16.xpose.msra.mxu0 0
      %559 = vmatprep.subr.bf16.mxu0 0
      %560 = vmatpush1.bf16.xpose.msra.mxu0 0
      %561 = vmatprep.subr.bf16.mxu0 0
      %562 = vmatpush1.bf16.xpose.msra.mxu0 0
      %563 = vmatprep.subr.bf16.mxu0 0
      %564 = vmatpush1.bf16.xpose.msra.mxu0 0
      %565 = vmatprep.subr.bf16.mxu0 0
      %566 = vmatpush1.bf16.xpose.msra.mxu0 0
      %567 = vmatprep.subr.bf16.mxu0 0
      %568 = vmatpush1.bf16.xpose.msra.mxu0 0
      %569 = vmatprep.subr.bf16.mxu0 0
      %570 = vmatpush1.bf16.xpose.msra.mxu0 0
      %571 = vmatprep.subr.bf16.mxu0 0
      %572 = vmatpush1.bf16.xpose.msra.mxu0 0
      %573 = vmatprep.subr.bf16.mxu0 0
      %574 = vmatpush1.bf16.xpose.msra.mxu0 0
      %575 = vmatprep.subr.bf16.mxu0 0
      %576 = vmatpush1.bf16.xpose.msra.mxu0 0
      %577 = vmatprep.subr.bf16.mxu0 0
      %578 = vmatpush1.bf16.xpose.msra.mxu0 0
      %579 = vmatprep.subr.bf16.mxu0 0
      %580 = vmatpush1.bf16.xpose.msra.mxu0 0
      %581 = vmatprep.subr.bf16.mxu0 0
      %582 = vmatpush1.bf16.xpose.msra.mxu0 0
      %583 = vmatprep.mubr.bf16.mxu0 0
      %584 = vmatmul.mubr.bf16.gmra.mrb[0].mxu0 %v546
      %v585 = vpop.f32.mrb[0].mxu0
      %v586 = vadd.f32 0.0, %v585
      %v587 = vpop.f32.mrb[0].mxu0
      %v588 = vpop.f32.mrb[0].mxu0
      %v589 = vpop.f32.mrb[0].mxu0
      %590 = vdwg.mxu0
      %s591 = smul.u32 %s449, 8
      %v592 = vlaneseq
      %v593 = vshrl.u32 %v592, 7
      %v594 = vstv %s591
      %v595 = vadd.s32 %v594, %v593
      %s596 = smul.u32 %s450, 8
      %v597 = vlaneseq
      %v598 = vand.u32 %v597, 127
      %v599 = vstv %s596
      %v600 = vadd.s32 %v599, %v598
      %vm601 = vcmp.gt.s32.totalorder %v600, %v595
      %v602 = vsel %vm601, -inf, %v586
      %v603 = vld [vmem:[#allocation2] sm:$0xff]
      %vm604 = vcmask 64512
      %v605 = vsel %vm604, %v602, -inf
      %606 = vmax.xlane.f32.xlu0 %v605
      %v607 = vpop.xlane.xlu0 %606
      %v608 = vmax.f32 %v603, %v607
      %v609 = vsub.f32 %v603, %v608
      %v610 = vmul.f32 %v609, 1.442695
      %v611 = vpow.pop %v610
      %613 = vset.pattern.permute.xlu0 0
      %614 = vperm.xlu0 %613, %v608
      %v615 = vpop.permute.xlu0 %614
      %v617 = vsub.f32 %v602, %v615
      %v618 = vmul.f32 %v617, 1.442695
      %v619 = vpow.pop %v618
      %v620 = vld [vmem:[#allocation3] sm:$0xff]
      %v621 = vmul.f32 %v611, %v620
      %v622 = vsel %vm604, %v619, 0.0
      %623 = vadd.xlane.f32.xlu0 %v622
      %v624 = vpop.xlane.xlu0 %623
      %v625 = vadd.f32 %v621, %v624
      %vm626 = vcmask 7168
      %627 = vst.msk [vmem:[#allocation3] sm:$0xff] %vm626, %v625
      %v628 = vld [vmem:[#allocation4] sm:$0xff]
      %630 = vset.pattern.permute.xlu0 0
      %631 = vperm.xlu0 %630, %v611
      %v632 = vpop.permute.xlu0 %631
      %v634 = vmul.f32 %v632, %v628
      %v635 = vpack.c.bf16 %v619, %v619
      %v637 = vsel %vm604, %v635, 0
      %vm639 = vcmask 1043456
      %v640 = vsel %vm639, %v542, 0
      %642 = vmatprep.subr.bf16.mxu0 0
      %643 = vmatpush1.bf16.msra.mxu0 %v640
      %644 = vmatprep.subr.bf16.mxu0 0
      %645 = vmatpush1.bf16.msra.mxu0 0
      %646 = vmatprep.subr.bf16.mxu0 0
      %647 = vmatpush1.bf16.msra.mxu0 0
      %648 = vmatprep.subr.bf16.mxu0 0
      %649 = vmatpush1.bf16.msra.mxu0 0
      %650 = vmatprep.subr.bf16.mxu0 0
      %651 = vmatpush1.bf16.msra.mxu0 0
      %652 = vmatprep.subr.bf16.mxu0 0
      %653 = vmatpush1.bf16.msra.mxu0 0
      %654 = vmatprep.subr.bf16.mxu0 0
      %655 = vmatpush1.bf16.msra.mxu0 0
      %656 = vmatprep.subr.bf16.mxu0 0
      %657 = vmatpush1.bf16.msra.mxu0 0
      %658 = vmatprep.subr.bf16.mxu0 0
      %659 = vmatpush1.bf16.msra.mxu0 0
      %660 = vmatprep.subr.bf16.mxu0 0
      %661 = vmatpush1.bf16.msra.mxu0 0
      %662 = vmatprep.subr.bf16.mxu0 0
      %663 = vmatpush1.bf16.msra.mxu0 0
      %664 = vmatprep.subr.bf16.mxu0 0
      %665 = vmatpush1.bf16.msra.mxu0 0
      %666 = vmatprep.subr.bf16.mxu0 0
      %667 = vmatpush1.bf16.msra.mxu0 0
      %668 = vmatprep.subr.bf16.mxu0 0
      %669 = vmatpush1.bf16.msra.mxu0 0
      %670 = vmatprep.subr.bf16.mxu0 0
      %671 = vmatpush1.bf16.msra.mxu0 0
      %672 = vmatprep.subr.bf16.mxu0 0
      %673 = vmatpush1.bf16.msra.mxu0 0
      %674 = vmatprep.mubr.bf16.mxu0 0
      %675 = vmatmul.mubr.bf16.gmra.mrb[0].mxu0 %v637
      %v676 = vpop.f32.mrb[0].mxu0
      %v677 = vadd.f32 0.0, %v676
      %v678 = vpop.f32.mrb[0].mxu0
      %v679 = vpop.f32.mrb[0].mxu0
      %v680 = vpop.f32.mrb[0].mxu0
      %681 = vdwg.mxu0
      %v682 = vadd.f32 %v634, %v677
      %vm683 = vcmask 130048
      %684 = vst.msk [vmem:[#allocation4] sm:$0xff] %vm683, %v682
      %685 = vst.msk [vmem:[#allocation2] sm:$0xff] %vm626, %v608
      %p686 = scmp.eq.s32.totalorder %s450, %s449
      // Predicated region
      $region49: #{_lambda_.8} parent=43 // pred_check
        %p687 = pneg %p686
      $region50: #{_lambda_.8} parent=43 // pred_check_branch
        %689 = sbr.rel (%p687) target = $region52
      $region51: #{_lambda_.8} parent=43 // pred_region
        %v690 = vld [vmem:[#allocation3] sm:$0xff]
        %v691 = vrcp.pop %v690
        %v692 = vld [vmem:[#allocation4] sm:$0xff]
        %694 = vset.pattern.permute.xlu0 0
        %695 = vperm.xlu0 %694, %v691
        %v696 = vpop.permute.xlu0 %695
        %v698 = vmul.f32 %v692, %v696
        %v699 = vld [vmem:[%s434] sm:$0xf]
        %v700 = vld [vmem:[%s434 + $0x4] sm:$0xf]
        %v701 = vpack.c.bf16 %v698, %v698
        %v704 = vunpack.c.l.b16 %v699
        %v705 = vunpack.c.l.b16 %v700
        %v706 = vpack.c.b16 %v705, %v704
        %v709 = vsel %vm683, %v701, 0
        %711 = vmatprep.subr.bf16.mxu0 0
        %712 = vmatpush1.bf16.msra.mxu0 %v706
        %713 = vmatprep.subr.bf16.mxu0 0
        %714 = vmatpush1.bf16.msra.mxu0 0
        %715 = vmatprep.subr.bf16.mxu0 0
        %716 = vmatpush1.bf16.msra.mxu0 0
        %717 = vmatprep.subr.bf16.mxu0 0
        %718 = vmatpush1.bf16.msra.mxu0 0
        %719 = vmatprep.subr.bf16.mxu0 0
        %720 = vmatpush1.bf16.msra.mxu0 0
        %721 = vmatprep.subr.bf16.mxu0 0
        %722 = vmatpush1.bf16.msra.mxu0 0
        %723 = vmatprep.subr.bf16.mxu0 0
        %724 = vmatpush1.bf16.msra.mxu0 0
        %725 = vmatprep.subr.bf16.mxu0 0
        %726 = vmatpush1.bf16.msra.mxu0 0
        %727 = vmatprep.subr.bf16.mxu0 0
        %728 = vmatpush1.bf16.msra.mxu0 0
        %729 = vmatprep.subr.bf16.mxu0 0
        %730 = vmatpush1.bf16.msra.mxu0 0
        %731 = vmatprep.subr.bf16.mxu0 0
        %732 = vmatpush1.bf16.msra.mxu0 0
        %733 = vmatprep.subr.bf16.mxu0 0
        %734 = vmatpush1.bf16.msra.mxu0 0
        %735 = vmatprep.subr.bf16.mxu0 0
        %736 = vmatpush1.bf16.msra.mxu0 0
        %737 = vmatprep.subr.bf16.mxu0 0
        %738 = vmatpush1.bf16.msra.mxu0 0
        %739 = vmatprep.subr.bf16.mxu0 0
        %740 = vmatpush1.bf16.msra.mxu0 0
        %741 = vmatprep.subr.bf16.mxu0 0
        %742 = vmatpush1.bf16.msra.mxu0 0
        %743 = vmatprep.mubr.bf16.mxu0 0
        %744 = vmatmul.mubr.bf16.gmra.mrb[0].mxu0 %v709
        %v745 = vpop.f32.mrb[0].mxu0
        %v746 = vadd.f32 0.0, %v745
        %v747 = vpop.f32.mrb[0].mxu0
        %v748 = vpop.f32.mrb[0].mxu0
        %v749 = vpop.f32.mrb[0].mxu0
        %750 = vdwg.mxu0
        %v751 = vpack.c.bf16 %v746, %v746
        %vm752 = vcmask 125952
        %753 = vst.msk [vmem:[%s446] sm:$0xf] %vm752, %v751
      $region52: #{_lambda_.8} parent=43 // pred_fallthru
        _
      %s754 = sld [smem:[#allocation7 + %s28]]
      %p755 = scmp.lt.s32.totalorder %s26, 1
      %s756 = scalar_select %p755, %s26, 1
      %p757 = scmp.lt.s32.totalorder %s27, 1
      %s758 = scalar_select %p757, %s27, 1
      %p759 = scmp.lt.s32.totalorder %s754, 0
      %s760 = scalar_select %p759, %s754, 0
      %s761 = sadd.s32 %s760, %s758
      %s762 = smul.addr %s756, 2
      %s763 = sadd.s32 %s761, %s762
      %s764 = smul.addr %s763, 4
      %s765 = scalar_lea.vmem %s8, %s764
      // Predicated region
      $region53: #{_lambda_.8} parent=43 // pred_check
        %p766 = pneg %p234
      $region54: #{_lambda_.8} parent=43 // pred_check_branch
        %768 = sbr.rel (%p766) target = $region56
      $region55: #{_lambda_.8} parent=43 // pred_region
        %s769 = sld [smem:[#allocation7 + %s28]]
      $region56: #{_lambda_.8} parent=43 // pred_fallthru
        _
    $region44: #{_lambda_.8} parent=5 // pred_fallthru
      _
    %p770 = scmp.le.s32.totalorder 2, %s16
    // Predicated region
    $region57: #{_lambda_.8} parent=5 // pred_check
      %p771 = pneg %p770
    $region58: #{_lambda_.8} parent=5 // pred_check_branch
      %773 = sbr.rel (%p771) target = $region60
    $region59: #{_lambda_.8} parent=5 // pred_region
      %s774 = ssub.s32 %s16, 2
      // Predicated region
      $region61: #{_lambda_.8} parent=59 // pred_check
        %p775 = pneg %p240
      $region62: #{_lambda_.8} parent=59 // pred_check_branch
        %777 = sbr.rel (%p775) target = $region64
      $region63: #{_lambda_.8} parent=59 // pred_region
        %s778 = sld [smem:[#allocation7 + %s31]]
        %p779 = scmp.lt.s32.totalorder %s29, 1
        %s780 = scalar_select %p779, %s29, 1
        %p781 = scmp.lt.s32.totalorder %s30, 1
        %s782 = scalar_select %p781, %s30, 1
        %p783 = scmp.lt.s32.totalorder %s778, 0
        %s784 = scalar_select %p783, %s778, 0
        %s785 = sadd.s32 %s784, %s782
        %s786 = smul.addr %s780, 2
        %s787 = sadd.s32 %s785, %s786
        %s788 = smul.addr %s787, 4
        %s789 = scalar_lea.vmem %s8, %s788
      $region64: #{_lambda_.8} parent=59 // pred_fallthru
        _
    $region60: #{_lambda_.8} parent=5 // pred_fallthru
      _
  $region6: #{_lambda_.8} parent=0 // loop_footer
    %s20 = sadd.s32 1, %s16
  $region7: #{_lambda_.8} parent=0 // loop_footer_branch
    %15 = sbr.rel target = $region3
  $region8: #{_lambda_.8} parent=0 // loop_exit
    _

// kernel: _lambda_.9
$region0: #{_lambda_.9}
  #allocation0 [shape = 'u32[]', space=smem, size = 0x4, offset = 0x4, fixed_abs, tag = 'smem constant byte address 0x4 - core index']
  #allocation1 [shape = 'u32[144,128]{1,0:T(1,128)}', space=vmem, size = 0x12000, scoped, tag = 'internal scratch']
  #allocation2 [shape = 'f32[16,32]{1,0:T(8,128)}', space=vmem, size = 0x2000, scoped, tag = 'scratch operand']
  %s0 = inlined_call_operand.vmem [shape: bf16[16,32], index: 0, kind: input, shape index: {}]
  %s1 = inlined_call_operand.vmem [shape: bf16[32,32], index: 1, kind: input, shape index: {}]
  %s2 = inlined_call_operand.vmem [shape: f32[1,32], index: 2, kind: input, shape index: {}]
  %s3 = inlined_call_operand.hbm [shape: f32[16,32], index: 3, kind: output, shape index: {}]
  %s4 = sld [smem:[#allocation0]]
  $region30: #{_lambda_.9} parent=0
    _
  %s6 = ssub.s32 1, %s4
  %s7 = scalar_select 0, %s6, %s4
  $region1: #{_lambda_.9} parent=0
    #allocation3 [shape = 'u8[8192]{0}', space=vmem, size = 0x2000, scoped, tag = 'output window, operand 0, single buffered']
    #allocation4 [shape = 's32[1]{0}', space=sflag, size = 0x4, scoped, tag = 'scoped memory for _lambda_.9']
    %8 = vsyncpa [#allocation4], 0
    // Predicated region
    $region2: #{_lambda_.9} parent=1 // pred_check
      _
    $region3: #{_lambda_.9} parent=1 // pred_check_branch
      %10 = sbr.rel (0) target = $region5
    $region4: #{_lambda_.9} parent=1 // pred_region
      _
    $region5: #{_lambda_.9} parent=1 // pred_fallthru
      _
    // Predicated region
    $region6: #{_lambda_.9} parent=1 // pred_check
      _
    $region7: #{_lambda_.9} parent=1 // pred_check_branch
      %12 = sbr.rel (0) target = $region9
    $region8: #{_lambda_.9} parent=1 // pred_region
      _
    $region9: #{_lambda_.9} parent=1 // pred_fallthru
      _
    // Predicated region
    $region10: #{_lambda_.9} parent=1 // pred_check
      _
    $region11: #{_lambda_.9} parent=1 // pred_check_branch
      %14 = sbr.rel (0) target = $region13
    $region12: #{_lambda_.9} parent=1 // pred_region
      _
    $region13: #{_lambda_.9} parent=1 // pred_fallthru
      _
    %p16 = scmp.eq.s32.totalorder 0, 0
    // Predicated region
    $region14: #{_lambda_.9} parent=1 // pred_check
      %p17 = pneg %p16
    $region15: #{_lambda_.9} parent=1 // pred_check_branch
      %19 = sbr.rel (%p17) target = $region17
    $region16: #{_lambda_.9} parent=1 // pred_region
      %vm20 = vcmask 261120
      %21 = vst.msk [vmem:[#allocation2] sm:$0xff] %vm20, 0.0
      %22 = vst.msk [vmem:[#allocation2 + $0x8] sm:$0xff] %vm20, 0.0
    $region17: #{_lambda_.9} parent=1 // pred_fallthru
      _
    %v23 = vld [vmem:[#allocation2] sm:$0xff]
    %v24 = vld [vmem:[#allocation2 + $0x8] sm:$0xff]
    %v25 = vld [vmem:[%s0] sm:$0xf]
    %v26 = vld [vmem:[%s0 + $0x4] sm:$0xf]
    %v27 = vld [vmem:[%s1] sm:$0xf]
    %v28 = vld [vmem:[%s1 + $0x4] sm:$0xf]
    %v29 = vld [vmem:[%s1 + $0x8] sm:$0xf]
    %v30 = vld [vmem:[%s1 + $0xc] sm:$0xf]
    %v33 = vunpack.c.l.b16 %v25
    %v34 = vunpack.c.l.b16 %v26
    %v35 = vpack.c.b16 %v34, %v33
    %v40 = vunpack.c.l.b16 %v27
    %v41 = vunpack.c.l.b16 %v28
    %v42 = vunpack.c.l.b16 %v29
    %v43 = vunpack.c.l.b16 %v30
    %v44 = vpack.c.b16 %v41, %v40
    %v45 = vpack.c.b16 %v43, %v42
    %vm48 = vcmask 261120
    %v50 = vsel %vm48, %v35, 0
    %52 = vmatprep.subr.bf16.mxu0 0
    %53 = vmatpush1.bf16.msra.mxu0 %v44
    %54 = vmatprep.subr.bf16.mxu0 0
    %55 = vmatpush1.bf16.msra.mxu0 %v45
    %56 = vmatprep.subr.bf16.mxu0 0
    %57 = vmatpush1.bf16.msra.mxu0 0
    %58 = vmatprep.subr.bf16.mxu0 0
    %59 = vmatpush1.bf16.msra.mxu0 0
    %60 = vmatprep.subr.bf16.mxu0 0
    %61 = vmatpush1.bf16.msra.mxu0 0
    %62 = vmatprep.subr.bf16.mxu0 0
    %63 = vmatpush1.bf16.msra.mxu0 0
    %64 = vmatprep.subr.bf16.mxu0 0
    %65 = vmatpush1.bf16.msra.mxu0 0
    %66 = vmatprep.subr.bf16.mxu0 0
    %67 = vmatpush1.bf16.msra.mxu0 0
    %68 = vmatprep.subr.bf16.mxu0 0
    %69 = vmatpush1.bf16.msra.mxu0 0
    %70 = vmatprep.subr.bf16.mxu0 0
    %71 = vmatpush1.bf16.msra.mxu0 0
    %72 = vmatprep.subr.bf16.mxu0 0
    %73 = vmatpush1.bf16.msra.mxu0 0
    %74 = vmatprep.subr.bf16.mxu0 0
    %75 = vmatpush1.bf16.msra.mxu0 0
    %76 = vmatprep.subr.bf16.mxu0 0
    %77 = vmatpush1.bf16.msra.mxu0 0
    %78 = vmatprep.subr.bf16.mxu0 0
    %79 = vmatpush1.bf16.msra.mxu0 0
    %80 = vmatprep.subr.bf16.mxu0 0
    %81 = vmatpush1.bf16.msra.mxu0 0
    %82 = vmatprep.subr.bf16.mxu0 0
    %83 = vmatpush1.bf16.msra.mxu0 0
    %84 = vmatprep.mubr.bf16.mxu0 0
    %85 = vmatmul.mubr.bf16.gmra.mrb[0].mxu0 %v50
    %v86 = vpop.f32.mrb[0].mxu0
    %v87 = vadd.f32 0.0, %v86
    %v88 = vpop.f32.mrb[0].mxu0
    %v89 = vpop.f32.mrb[0].mxu0
    %v90 = vadd.f32 0.0, %v89
    %v91 = vpop.f32.mrb[0].mxu0
    %92 = vdwg.mxu0
    %v93 = vadd.f32 %v23, %v87
    %v94 = vadd.f32 %v24, %v90
    %95 = vst.msk [vmem:[#allocation2] sm:$0xff] %vm48, %v93
    %96 = vst.msk [vmem:[#allocation2 + $0x8] sm:$0xff] %vm48, %v94
    // Predicated region
    $region18: #{_lambda_.9} parent=1 // pred_check
      %p97 = pneg %p16
    $region19: #{_lambda_.9} parent=1 // pred_check_branch
      %99 = sbr.rel (%p97) target = $region21
    $region20: #{_lambda_.9} parent=1 // pred_region
      %v100 = vld [vmem:[#allocation2] sm:$0xff]
      %v101 = vld [vmem:[#allocation2 + $0x8] sm:$0xff]
      %v102 = vld [vmem:[%s2] sm:$0x1]
      %v104 = vlaneseq
      %v105 = vshrl.u32 %v104, 7
      %v106 = vsub.s32 0, %v105
      %v107 = vrot.slane %v102, %v106
      %v109 = vadd.f32 %v100, %v107
      %v110 = vadd.f32 %v101, %v107
      %111 = vst.msk [vmem:[#allocation3] sm:$0xff] %vm48, %v109
      %112 = vst.msk [vmem:[#allocation3 + $0x8] sm:$0xff] %vm48, %v110
    $region21: #{_lambda_.9} parent=1 // pred_fallthru
      _
    // Predicated region
    $region22: #{_lambda_.9} parent=1 // pred_check
      _
    $region23: #{_lambda_.9} parent=1 // pred_check_branch
      %114 = sbr.rel (0) target = $region25
    $region24: #{_lambda_.9} parent=1 // pred_region
      %s116 = ssub.s32 256, 256
      %117 = vsyncadd [#allocation4], %s116
      %s118 = sshll.u32 [#allocation3], 4
      %s119 = int_to_ptr.vmem [resolvable:$true] %s118
      %124 = dma.vmem_to_hbm [thread:$0]  %s119, 256, %s3, [#allocation4], 128, 128, 8
    $region25: #{_lambda_.9} parent=1 // pred_fallthru
      _
    // Predicated region
    $region26: #{_lambda_.9} parent=1 // pred_check
      _
    $region27: #{_lambda_.9} parent=1 // pred_check_branch
      %126 = sbr.rel (0) target = $region29
    $region28: #{_lambda_.9} parent=1 // pred_region
      %127 = dma.done [#allocation4], 256
    $region29: #{_lambda_.9} parent=1 // pred_fallthru
      _
    %128 = vsyncpa [#allocation4], 1

</llo_original>
